<compile_context>
chip_gen: v7x
topology: tpu7x:2x2x1
jax: 0.10.0
libtpu: 0.0.40
codegen_flags: <defaults>
</compile_context>

<pallas_src>
import functools

import jax
import jax.numpy as jnp
from jax import lax
from jax.experimental import pallas as pl
from jax.experimental.pallas import tpu as pltpu


def _round_up(x, m):
    return (x + m - 1) // m * m


def _num_tensorcores_per_chip():
    """2 on megacore chips (v7x); 1 on v5e/v6e. Conservative fallback: 1."""
    try:
        kind = jax.devices()[0].device_kind.lower()
    except Exception:
        return 1
    return 2 if ("v7" in kind or "7x" in kind) else 1


def _vmem_limit_bytes():
    # v7x: 64 MiB physical VMEM per TensorCore -> stay under ~48 MiB.
    # v5e/v6e: 128 MiB physical -> raise the 16/32 MiB default scoped limit.
    return (48 << 20) if _num_tensorcores_per_chip() >= 2 else (96 << 20)


def _pick_batch_tile(bp):
    # Split the batch into 2 tiles only when the chip actually has 2
    # TensorCores to run them in parallel; on single-TC chips a split just
    # halves the MXU M-dim and doubles per-grid-step overhead. Each half must
    # stay a multiple of 16 sublanes so bf16 gi/out blocks remain dense.
    if _num_tensorcores_per_chip() >= 2 and bp >= 32 and (bp // 2) % 16 == 0:
        return bp // 2
    return bp


def _pick_time_chunk(T, Bt, Hp, out_bytes, budget):
    """Largest time-chunk Tc<=16 whose pipelined VMEM footprint fits budget."""
    fixed = Hp * 3 * Hp * 2            # W_hh^T bf16, single-buffered scratch
    fixed += 2 * Bt * Hp * 4           # h0 input block (double-buffered)
    fixed += 2 * Bt * Hp * 4           # final-hidden output block
    fixed += Bt * Hp * 4               # hidden-carry scratch
    fixed += 2 * 2 * Hp * 4            # b_hn block (tiny)
    tc = min(16, T)
    while tc > 1:
        per_chunk = (2 * tc * Bt * 3 * Hp * 2          # gi blocks (bf16) x2 buffers
                     + 2 * tc * Bt * Hp * out_bytes)   # out blocks      x2 buffers
        if fixed + per_chunk <= budget:
            break
        tc -= 1
    return max(tc, 1)


def _gru_chunk_kernel(gi_ref, h0_ref, whh_hbm, bhn_ref, out_ref, hN_ref,
                      whh_vmem, whh_sem, h_scratch,
                      *, hidden_pad, chunk, seq_len, unroll):
    """Run `chunk` consecutive GRU time steps for one batch tile.

    gi_ref   : (chunk, Bt, 3Hp) bf16  x @ W_ih^T + b_ih + [b_hr, b_hz, 0]
    h0_ref   : (Bt, Hp)         f32   initial hidden for this batch tile
    whh_hbm  : (Hp, 3Hp)        bf16  transposed recurrent weight (HBM ref)
    bhn_ref  : (1, Hp)          f32   n-gate recurrent bias (can't be folded)
    out_ref  : (chunk, Bt, Hp)        per-step hidden outputs
    hN_ref   : (Bt, Hp)         f32   final hidden (resident; last chunk only)
    whh_vmem : (Hp, 3Hp)        bf16  single-buffered VMEM home of W_hh^T
    whh_sem  :                        DMA completion semaphore
    h_scratch: (Bt, Hp)         f32   hidden carry across time chunks
    """
    Hp = hidden_pad
    tc = pl.program_id(1)

    @pl.when(tc == 0)
    def _():
        # DMA the recurrent weight once (per batch tile) into a persistent,
        # SINGLE VMEM buffer: its block index never changes, so letting the
        # BlockSpec pipeline double-buffer it would waste Hp*3Hp*2 bytes.
        cp = pltpu.make_async_copy(whh_hbm, whh_vmem, whh_sem)
        cp.start()
        cp.wait()
        h_scratch[...] = h0_ref[...].astype(jnp.float32)

    whh = whh_vmem[...]          # (Hp, 3Hp) bf16, loop-invariant
    bhn = bhn_ref[...]           # (1, Hp)  f32, implicit broadcast in the add

    def step(i, h_prev):
        gi = gi_ref[i].astype(jnp.float32)                       # (Bt, 3Hp)
        gh = jnp.dot(h_prev.astype(jnp.bfloat16), whh,
                     preferred_element_type=jnp.float32)         # (Bt, 3Hp)
        i_r, i_z, i_n = gi[:, :Hp], gi[:, Hp:2 * Hp], gi[:, 2 * Hp:]
        h_r, h_z, h_n = gh[:, :Hp], gh[:, Hp:2 * Hp], gh[:, 2 * Hp:]
        r = jax.nn.sigmoid(i_r + h_r)          # b_ir + b_hr folded into gi
        z = jax.nn.sigmoid(i_z + h_z)          # b_iz + b_hz folded into gi
        n = jnp.tanh(i_n + r * (h_n + bhn))    # b_hn must stay inside r*(...)
        h_new = (1.0 - z) * n + z * h_prev     # f32 gate math
        if seq_len is not None:
            # T was padded up to a multiple of Tc: clamp the carry on padded
            # steps so the final hidden equals h at the last *valid* step.
            valid = (tc * chunk + i) < seq_len
            h_new = jnp.where(valid, h_new, h_prev)
        out_ref[i] = h_new.astype(out_ref.dtype)
        return h_new

    h_last = lax.fori_loop(0, chunk, step, h_scratch[...], unroll=unroll)
    h_scratch[...] = h_last

    @pl.when(tc == pl.num_programs(1) - 1)
    def _():
        hN_ref[...] = h_last.astype(hN_ref.dtype)


def gru_recurrence(gi, h0, whh_bf16, bhn, *, out_dtype):
    """Recurrent part of one GRU layer.

    gi        : (T, Bp, 3Hp) bf16  precomputed input projection (+ folded biases)
    h0        : (Bp, Hp)     f32
    whh_bf16  : (Hp, 3Hp)    bf16  gate-block padded, transposed W_hh
    bhn       : (1, Hp)      f32   n-gate recurrent bias
    returns (out (T, Bp, Hp) out_dtype, h_final (Bp, Hp) f32)
    """
    T, Bp, G3 = gi.shape
    Hp = G3 // 3
    Bt = _pick_batch_tile(Bp)
    nbt = Bp // Bt

    vmem_limit = _vmem_limit_bytes()
    budget = vmem_limit - (8 << 20)                    # headroom for compiler
    out_bytes = jnp.dtype(out_dtype).itemsize
    Tc = _pick_time_chunk(T, Bt, Hp, out_bytes, budget)

    T_pad = _round_up(T, Tc)
    if T_pad != T:
        gi = jnp.pad(gi, ((0, T_pad - T), (0, 0), (0, 0)))
    nchunks = T_pad // Tc

    # Full unroll only when a step's (Bt,3Hp) temporaries fit comfortably in
    # vregs; otherwise a modest unroll still overlaps loads with the matmul.
    unroll = True if Bt * Hp <= 32 * 128 else 4

    kernel = functools.partial(
        _gru_chunk_kernel, hidden_pad=Hp, chunk=Tc,
        seq_len=(T if T_pad != T else None), unroll=unroll)

    out, h_final = pl.pallas_call(
        kernel,
        out_shape=(
            jax.ShapeDtypeStruct((T_pad, Bp, Hp), out_dtype),
            jax.ShapeDtypeStruct((Bp, Hp), jnp.float32),
        ),
        grid_spec=pltpu.PrefetchScalarGridSpec(
            num_scalar_prefetch=0,
            grid=(nbt, nchunks),
            in_specs=[
                pl.BlockSpec((Tc, Bt, 3 * Hp), lambda b, t: (t, b, 0)),  # gi (bf16)
                pl.BlockSpec((Bt, Hp), lambda b, t: (b, 0)),             # h0 tile
                pl.BlockSpec(memory_space=pl.ANY),                       # W_hh^T in HBM
                pl.BlockSpec((1, Hp), lambda b, t: (0, 0)),              # b_hn
            ],
            out_specs=[
                pl.BlockSpec((Tc, Bt, Hp), lambda b, t: (t, b, 0)),      # h_t outputs
                pl.BlockSpec((Bt, Hp), lambda b, t: (b, 0)),             # final hidden
            ],
            scratch_shapes=[
                pltpu.VMEM((Hp, 3 * Hp), jnp.bfloat16),   # W_hh^T, single copy
                pltpu.SemaphoreType.DMA(()),              # its DMA semaphore
                pltpu.VMEM((Bt, Hp), jnp.float32),        # hidden carry
            ],
        ),
        compiler_params=pltpu.CompilerParams(
            dimension_semantics=("parallel", "arbitrary"),
            vmem_limit_bytes=vmem_limit),
    )(gi, h0, whh_bf16, bhn)

    if T_pad != T:
        out = out[:T]
    return out, h_final


class EncoderRNNPallas:
    """JAX/Pallas port of the PyTorch EncoderRNN (embedding + multi-layer GRU)."""

    def __init__(self, vocab_size, hidden_size, nlayers=2, key=None):
        self.vocab_size = vocab_size
        self.hidden_size = hidden_size
        self.nlayers = nlayers
        if key is None:
            key = jax.random.PRNGKey(0)

        H = hidden_size
        Hp = _round_up(H, 128)
        self._hidden_pad = Hp

        k_emb, key = jax.random.split(key)
        # nn.Embedding default init: N(0, 1)
        self.embedding = jax.random.normal(
            k_emb, (vocab_size, H), dtype=jnp.float32)
        self._embedding_pad = jnp.pad(self.embedding, ((0, 0), (0, Hp - H)))

        # nn.GRU default init: U(-1/sqrt(H), 1/sqrt(H)) for all weights/biases.
        bound = 1.0 / float(jnp.sqrt(jnp.float32(H)))
        self.layers = []        # original torch-layout f32 parameters
        self._layers_pad = []   # (wih_t bf16, whh_t bf16, gi_bias f32, bhn f32)
        for _ in range(nlayers):
            key, k1, k2, k3, k4 = jax.random.split(key, 5)
            w_ih = jax.random.uniform(k1, (3 * H, H), minval=-bound,
                                      maxval=bound, dtype=jnp.float32)
            w_hh = jax.random.uniform(k2, (3 * H, H), minval=-bound,
                                      maxval=bound, dtype=jnp.float32)
            b_ih = jax.random.uniform(k3, (3 * H,), minval=-bound,
                                      maxval=bound, dtype=jnp.float32)
            b_hh = jax.random.uniform(k4, (3 * H,), minval=-bound,
                                      maxval=bound, dtype=jnp.float32)
            self.layers.append((w_ih, w_hh, b_ih, b_hh))

            # Fold b_ih and the r/z components of b_hh into the precomputed
            # input projection; only b_hn must stay inside r*(W_hn h + b_hn).
            b_fold = b_ih + jnp.concatenate(
                [b_hh[:2 * H], jnp.zeros((H,), b_hh.dtype)])
            bhn = jnp.zeros((1, Hp), jnp.float32).at[0, :H].set(b_hh[2 * H:])
            self._layers_pad.append((
                self._pad_gate_weight(w_ih, H, Hp).astype(jnp.bfloat16),
                self._pad_gate_weight(w_hh, H, Hp).astype(jnp.bfloat16),
                self._pad_gate_bias(b_fold, H, Hp),      # (3Hp,)  f32
                bhn,                                     # (1, Hp) f32
            ))

    @staticmethod
    def _pad_gate_weight(w, H, Hp):
        # (3H, H) torch layout -> transposed (Hp, 3Hp) with each gate block of
        # width H placed at a lane-aligned offset g*Hp; padding rows/cols = 0.
        # NOTE: correctness of lane padding relies on these zeros AND on
        # zero-padded h0 (padded lanes then stay exactly 0 in the recurrence).
        wt = jnp.transpose(w)                      # (H, 3H)
        out = jnp.zeros((Hp, 3 * Hp), dtype=w.dtype)
        for g in range(3):
            out = out.at[:H, g * Hp:g * Hp + H].set(wt[:, g * H:(g + 1) * H])
        return out

    @staticmethod
    def _pad_gate_bias(b, H, Hp):
        out = jnp.zeros((3 * Hp,), dtype=b.dtype)
        for g in range(3):
            out = out.at[g * Hp:g * Hp + H].set(b[g * H:(g + 1) * H])
        return out

    def init_hidden(self, bsz):
        return jnp.zeros((self.nlayers, bsz, self.hidden_size), dtype=jnp.float32)

    def __call__(self, token_ids, hidden):
        """token_ids: (T, B) int32; hidden: (nlayers, B, H) f32.

        Returns (output (T, B, H), hidden (nlayers, B, H)) like torch.nn.GRU.
        """
        T, B = token_ids.shape
        H, Hp = self.hidden_size, self._hidden_pad
        Bp = _round_up(B, 16)       # 16 sublanes keeps bf16 gi/out blocks dense

        # Embedding lookup (gather) is plain-JAX glue; padded to (T, Bp, Hp).
        x = jnp.take(self._embedding_pad, token_ids, axis=0)      # (T, B, Hp)
        if Bp != B:
            x = jnp.pad(x, ((0, 0), (0, Bp - B), (0, 0)))
        h0 = hidden
        if Bp != B or Hp != H:
            h0 = jnp.pad(hidden, ((0, 0), (0, Bp - B), (0, Hp - H)))

        layer_in = x
        finals = []
        for li, (wih_t, whh_t, gi_bias, bhn) in enumerate(self._layers_pad):
            # Bulk input projection for the whole sequence (one big bf16 MXU
            # matmul, biases folded in); stored in bf16 to halve the HBM/DMA
            # stream into the recurrence kernel.
            gi = jnp.dot(layer_in.reshape(T * Bp, Hp).astype(jnp.bfloat16),
                         wih_t, preferred_element_type=jnp.float32) + gi_bias
            gi = gi.astype(jnp.bfloat16).reshape(T, Bp, 3 * Hp)
            out_dtype = jnp.float32 if li == self.nlayers - 1 else jnp.bfloat16
            layer_in, h_fin = gru_recurrence(
                gi, h0[li], whh_t, bhn, out_dtype=out_dtype)
            finals.append(h_fin)
        # TODO(synk): optionally fuse the NEXT layer's input projection into
        # the chunk epilogue to skip one inter-layer HBM round trip per layer.

        output = layer_in[:, :B, :H].astype(jnp.float32)
        hidden_out = jnp.stack(finals, axis=0)[:, :B, :H]
        return output, hidden_out


def _reference_forward(model, token_ids, hidden):
    """Pure-f32 jnp reference matching torch.nn.Embedding + torch.nn.GRU."""
    x = jnp.take(model.embedding, token_ids, axis=0)     # (T, B, H)
    layer_in = x
    finals = []
    for li, (w_ih, w_hh, b_ih, b_hh) in enumerate(model.layers):
        def step(h, x_t, w_ih=w_ih, w_hh=w_hh, b_ih=b_ih, b_hh=b_hh):
            gi = x_t @ w_ih.T + b_ih
            gh = h @ w_hh.T + b_hh
            i_r, i_z, i_n = jnp.split(gi, 3, axis=-1)
            h_r, h_z, h_n = jnp.split(gh, 3, axis=-1)
            r = jax.nn.sigmoid(i_r + h_r)
            z = jax.nn.sigmoid(i_z + h_z)
            n = jnp.tanh(i_n + r * h_n)
            h_new = (1.0 - z) * n + z * h
            return h_new, h_new
        h_fin, ys = lax.scan(step, hidden[li], layer_in)
        layer_in = ys
        finals.append(h_fin)
    return layer_in, jnp.stack(finals, axis=0)


if __name__ == "__main__":
    vocab_size = 16
    hidden_size = 32
    nlayers = 2
    seq_len = 8
    batch = 2

    key = jax.random.PRNGKey(0)
    k_tok, k_model = jax.random.split(key)

    token_ids = jax.random.randint(k_tok, (seq_len, batch), 0, vocab_size,
                                   dtype=jnp.int32)
    model = EncoderRNNPallas(vocab_size, hidden_size, nlayers, key=k_model)
    h0 = model.init_hidden(batch)

    output, hidden = model(token_ids, h0)
    output = jax.block_until_ready(output)
    hidden = jax.block_until_ready(hidden)

    assert output.shape == (seq_len, batch, hidden_size)
    assert hidden.shape == (nlayers, batch, hidden_size)
    assert output.dtype == jnp.float32 and hidden.dtype == jnp.float32

    # Tolerance check against a pure-f32 reference (kernel uses bf16 gi /
    # recurrent weights, so bit-exactness is not expected).
    ref_out, ref_hid = _reference_forward(model, token_ids, h0)
    out_err = float(jnp.max(jnp.abs(output - ref_out)))
    hid_err = float(jnp.max(jnp.abs(hidden - ref_hid)))
    assert out_err < 5e-2 and hid_err < 5e-2, (out_err, hid_err)

    print("KERNEL_OK")
</pallas_src>

<mosaic_0001>
module attributes {stable_mosaic.version = 11 : i64} {
  func.func @_gru_chunk_kernel(%arg0: i32, %arg1: i32, %arg2: memref<8x16x384xbf16, #tpu.memory_space<vmem>>, %arg3: memref<16x128xf32, #tpu.memory_space<vmem>>, %arg4: memref<128x384xbf16, #tpu.memory_space<any>>, %arg5: memref<1x128xf32, #tpu.memory_space<vmem>>, %arg6: memref<8x16x128xbf16, #tpu.memory_space<vmem>>, %arg7: memref<16x128xf32, #tpu.memory_space<vmem>>, %arg8: memref<128x384xbf16, #tpu.memory_space<vmem>>, %arg9: memref<!tpu.dma_semaphore, #tpu.memory_space<semaphore_mem>>, %arg10: memref<16x128xf32, #tpu.memory_space<vmem>>) attributes {dimension_semantics = [#tpu.dimension_semantics<parallel>, #tpu.dimension_semantics<arbitrary>], iteration_bounds = array<i64: 1, 1>, scalar_prefetch = 0 : i64, scratch_operands = 3 : i64, tpu.core_type = #tpu.core_type<tc>, window_params = [{transform_indices = @transform_0, window_bounds = array<i64: 8, 16, 384>}, {transform_indices = @transform_1, window_bounds = array<i64: 16, 128>}, {}, {pipeline_mode = #tpu.pipeline_mode<synchronous>, transform_indices = @transform_3, window_bounds = array<i64: 1, 128>}, {transform_indices = @transform_4, window_bounds = array<i64: 8, 16, 128>}, {transform_indices = @transform_5, window_bounds = array<i64: 16, 128>}]} {
    %c0_i32 = arith.constant 0 : i32
    %0 = arith.cmpi eq, %arg1, %c0_i32 : i32
    %1 = arith.extui %0 : i1 to i32
    %c0_i32_0 = arith.constant 0 : i32
    %2 = arith.cmpi ne, %1, %c0_i32_0 : i32
    scf.if %2 {
      tpu.enqueue_dma source(%arg4 : memref<128x384xbf16, #tpu.memory_space<any>>) target(%arg8 : memref<128x384xbf16, #tpu.memory_space<vmem>>) target_semaphore(%arg9 : memref<!tpu.dma_semaphore, #tpu.memory_space<semaphore_mem>>)
      tpu.wait_dma2 semaphore(%arg9 : memref<!tpu.dma_semaphore, #tpu.memory_space<semaphore_mem>>) src(%arg4 : memref<128x384xbf16, #tpu.memory_space<any>>) dst(%arg8 : memref<128x384xbf16, #tpu.memory_space<vmem>>)
      %c0_74 = arith.constant 0 : index
      %c0_75 = arith.constant 0 : index
      %322 = vector.load %arg3[%c0_74, %c0_75] : memref<16x128xf32, #tpu.memory_space<vmem>>, vector<16x128xf32>
      %c0_76 = arith.constant 0 : index
      %c0_77 = arith.constant 0 : index
      %323 = vector.load %arg10[%c0_76, %c0_77] : memref<16x128xf32, #tpu.memory_space<vmem>>, vector<16x128xf32>
      tpu.vector_store %arg10[%c0_76, %c0_77], %322 {strides = array<i32>} : memref<16x128xf32, #tpu.memory_space<vmem>>, vector<16x128xf32>,
    } else {
    }
    %c0 = arith.constant 0 : index
    %c0_1 = arith.constant 0 : index
    %3 = vector.load %arg8[%c0, %c0_1] : memref<128x384xbf16, #tpu.memory_space<vmem>>, vector<128x384xbf16>
    %c0_2 = arith.constant 0 : index
    %c0_3 = arith.constant 0 : index
    %4 = vector.load %arg5[%c0_2, %c0_3] : memref<1x128xf32, #tpu.memory_space<vmem>>, vector<1x128xf32>
    %c0_4 = arith.constant 0 : index
    %c0_5 = arith.constant 0 : index
    %5 = vector.load %arg10[%c0_4, %c0_5] : memref<16x128xf32, #tpu.memory_space<vmem>>, vector<16x128xf32>
    %c0_i32_6 = arith.constant 0 : i32
    %6 = arith.index_cast %c0_i32_6 : i32 to index
    %c0_7 = arith.constant 0 : index
    %c0_8 = arith.constant 0 : index
    %7 = vector.load %arg2[%6, %c0_7, %c0_8] : memref<8x16x384xbf16, #tpu.memory_space<vmem>>, vector<1x16x384xbf16>
    %8 = vector.shape_cast %7 : vector<1x16x384xbf16> to vector<16x384xbf16>
    %9 = arith.extf %8 : vector<16x384xbf16> to vector<16x384xf32>
    %10 = arith.truncf %5 : vector<16x128xf32> to vector<16x128xbf16>
    %cst = arith.constant dense<0.000000e+00> : vector<16x384xf32>
    %11 = tpu.matmul %10, %3, %cst {dimension_numbers = #tpu.dot_dimension_numbers<[1], [0], [0], [1], [0, 0, 1, 1], [], []>} : vector<16x128xbf16>, vector<128x384xbf16>, vector<16x384xf32> -> vector<16x384xf32>
    %12 = vector.extract_strided_slice %9 {offsets = [0, 0], sizes = [16, 128], strides = [1, 1]} : vector<16x384xf32> to vector<16x128xf32>
    %13 = vector.extract_strided_slice %9 {offsets = [0, 128], sizes = [16, 128], strides = [1, 1]} : vector<16x384xf32> to vector<16x128xf32>
    %14 = vector.extract_strided_slice %9 {offsets = [0, 256], sizes = [16, 128], strides = [1, 1]} : vector<16x384xf32> to vector<16x128xf32>
    %15 = vector.extract_strided_slice %11 {offsets = [0, 0], sizes = [16, 128], strides = [1, 1]} : vector<16x384xf32> to vector<16x128xf32>
    %16 = vector.extract_strided_slice %11 {offsets = [0, 128], sizes = [16, 128], strides = [1, 1]} : vector<16x384xf32> to vector<16x128xf32>
    %17 = vector.extract_strided_slice %11 {offsets = [0, 256], sizes = [16, 128], strides = [1, 1]} : vector<16x384xf32> to vector<16x128xf32>
    %18 = arith.addf %12, %15 : vector<16x128xf32>
    %19 = arith.negf %18 : vector<16x128xf32>
    %20 = math.exp %19 : vector<16x128xf32>
    %cst_9 = arith.constant 1.000000e+00 : f32
    %21 = vector.broadcast %cst_9 : f32 to vector<16x128xf32>
    %22 = arith.addf %21, %20 : vector<16x128xf32>
    %23 = arith.divf %21, %22 : vector<16x128xf32>
    %24 = arith.addf %13, %16 : vector<16x128xf32>
    %25 = arith.negf %24 : vector<16x128xf32>
    %26 = math.exp %25 : vector<16x128xf32>
    %cst_10 = arith.constant 1.000000e+00 : f32
    %27 = vector.broadcast %cst_10 : f32 to vector<16x128xf32>
    %28 = arith.addf %27, %26 : vector<16x128xf32>
    %29 = arith.divf %27, %28 : vector<16x128xf32>
    %30 = vector.broadcast %4 : vector<1x128xf32> to vector<16x128xf32>
    %31 = arith.addf %17, %30 : vector<16x128xf32>
    %32 = arith.mulf %23, %31 : vector<16x128xf32>
    %33 = arith.addf %14, %32 : vector<16x128xf32>
    %34 = math.tanh %33 : vector<16x128xf32>
    %cst_11 = arith.constant 1.000000e+00 : f32
    %35 = vector.broadcast %cst_11 : f32 to vector<16x128xf32>
    %36 = arith.subf %35, %29 : vector<16x128xf32>
    %37 = arith.mulf %36, %34 : vector<16x128xf32>
    %38 = arith.mulf %29, %5 : vector<16x128xf32>
    %39 = arith.addf %37, %38 : vector<16x128xf32>
    %40 = arith.truncf %39 : vector<16x128xf32> to vector<16x128xbf16>
    %41 = arith.index_cast %c0_i32_6 : i32 to index
    %c0_12 = arith.constant 0 : index
    %c0_13 = arith.constant 0 : index
    %42 = vector.load %arg6[%41, %c0_12, %c0_13] : memref<8x16x128xbf16, #tpu.memory_space<vmem>>, vector<1x16x128xbf16>
    %43 = vector.shape_cast %42 : vector<1x16x128xbf16> to vector<16x128xbf16>
    %44 = vector.shape_cast %40 : vector<16x128xbf16> to vector<1x16x128xbf16>
    tpu.vector_store %arg6[%41, %c0_12, %c0_13], %44 {strides = array<i32>} : memref<8x16x128xbf16, #tpu.memory_space<vmem>>, vector<1x16x128xbf16>,
    %c1_i32 = arith.constant 1 : i32
    %45 = arith.index_cast %c1_i32 : i32 to index
    %c0_14 = arith.constant 0 : index
    %c0_15 = arith.constant 0 : index
    %46 = vector.load %arg2[%45, %c0_14, %c0_15] : memref<8x16x384xbf16, #tpu.memory_space<vmem>>, vector<1x16x384xbf16>
    %47 = vector.shape_cast %46 : vector<1x16x384xbf16> to vector<16x384xbf16>
    %48 = arith.extf %47 : vector<16x384xbf16> to vector<16x384xf32>
    %49 = arith.truncf %39 : vector<16x128xf32> to vector<16x128xbf16>
    %cst_16 = arith.constant dense<0.000000e+00> : vector<16x384xf32>
    %50 = tpu.matmul %49, %3, %cst_16 {dimension_numbers = #tpu.dot_dimension_numbers<[1], [0], [0], [1], [0, 0, 1, 1], [], []>} : vector<16x128xbf16>, vector<128x384xbf16>, vector<16x384xf32> -> vector<16x384xf32>
    %51 = vector.extract_strided_slice %48 {offsets = [0, 0], sizes = [16, 128], strides = [1, 1]} : vector<16x384xf32> to vector<16x128xf32>
    %52 = vector.extract_strided_slice %48 {offsets = [0, 128], sizes = [16, 128], strides = [1, 1]} : vector<16x384xf32> to vector<16x128xf32>
    %53 = vector.extract_strided_slice %48 {offsets = [0, 256], sizes = [16, 128], strides = [1, 1]} : vector<16x384xf32> to vector<16x128xf32>
    %54 = vector.extract_strided_slice %50 {offsets = [0, 0], sizes = [16, 128], strides = [1, 1]} : vector<16x384xf32> to vector<16x128xf32>
    %55 = vector.extract_strided_slice %50 {offsets = [0, 128], sizes = [16, 128], strides = [1, 1]} : vector<16x384xf32> to vector<16x128xf32>
    %56 = vector.extract_strided_slice %50 {offsets = [0, 256], sizes = [16, 128], strides = [1, 1]} : vector<16x384xf32> to vector<16x128xf32>
    %57 = arith.addf %51, %54 : vector<16x128xf32>
    %58 = arith.negf %57 : vector<16x128xf32>
    %59 = math.exp %58 : vector<16x128xf32>
    %cst_17 = arith.constant 1.000000e+00 : f32
    %60 = vector.broadcast %cst_17 : f32 to vector<16x128xf32>
    %61 = arith.addf %60, %59 : vector<16x128xf32>
    %62 = arith.divf %60, %61 : vector<16x128xf32>
    %63 = arith.addf %52, %55 : vector<16x128xf32>
    %64 = arith.negf %63 : vector<16x128xf32>
    %65 = math.exp %64 : vector<16x128xf32>
    %cst_18 = arith.constant 1.000000e+00 : f32
    %66 = vector.broadcast %cst_18 : f32 to vector<16x128xf32>
    %67 = arith.addf %66, %65 : vector<16x128xf32>
    %68 = arith.divf %66, %67 : vector<16x128xf32>
    %69 = vector.broadcast %4 : vector<1x128xf32> to vector<16x128xf32>
    %70 = arith.addf %56, %69 : vector<16x128xf32>
    %71 = arith.mulf %62, %70 : vector<16x128xf32>
    %72 = arith.addf %53, %71 : vector<16x128xf32>
    %73 = math.tanh %72 : vector<16x128xf32>
    %cst_19 = arith.constant 1.000000e+00 : f32
    %74 = vector.broadcast %cst_19 : f32 to vector<16x128xf32>
    %75 = arith.subf %74, %68 : vector<16x128xf32>
    %76 = arith.mulf %75, %73 : vector<16x128xf32>
    %77 = arith.mulf %68, %39 : vector<16x128xf32>
    %78 = arith.addf %76, %77 : vector<16x128xf32>
    %79 = arith.truncf %78 : vector<16x128xf32> to vector<16x128xbf16>
    %80 = arith.index_cast %c1_i32 : i32 to index
    %c0_20 = arith.constant 0 : index
    %c0_21 = arith.constant 0 : index
    %81 = vector.load %arg6[%80, %c0_20, %c0_21] : memref<8x16x128xbf16, #tpu.memory_space<vmem>>, vector<1x16x128xbf16>
    %82 = vector.shape_cast %81 : vector<1x16x128xbf16> to vector<16x128xbf16>
    %83 = vector.shape_cast %79 : vector<16x128xbf16> to vector<1x16x128xbf16>
    tpu.vector_store %arg6[%80, %c0_20, %c0_21], %83 {strides = array<i32>} : memref<8x16x128xbf16, #tpu.memory_space<vmem>>, vector<1x16x128xbf16>,
    %c2_i32 = arith.constant 2 : i32
    %84 = arith.index_cast %c2_i32 : i32 to index
    %c0_22 = arith.constant 0 : index
    %c0_23 = arith.constant 0 : index
    %85 = vector.load %arg2[%84, %c0_22, %c0_23] : memref<8x16x384xbf16, #tpu.memory_space<vmem>>, vector<1x16x384xbf16>
    %86 = vector.shape_cast %85 : vector<1x16x384xbf16> to vector<16x384xbf16>
    %87 = arith.extf %86 : vector<16x384xbf16> to vector<16x384xf32>
    %88 = arith.truncf %78 : vector<16x128xf32> to vector<16x128xbf16>
    %cst_24 = arith.constant dense<0.000000e+00> : vector<16x384xf32>
    %89 = tpu.matmul %88, %3, %cst_24 {dimension_numbers = #tpu.dot_dimension_numbers<[1], [0], [0], [1], [0, 0, 1, 1], [], []>} : vector<16x128xbf16>, vector<128x384xbf16>, vector<16x384xf32> -> vector<16x384xf32>
    %90 = vector.extract_strided_slice %87 {offsets = [0, 0], sizes = [16, 128], strides = [1, 1]} : vector<16x384xf32> to vector<16x128xf32>
    %91 = vector.extract_strided_slice %87 {offsets = [0, 128], sizes = [16, 128], strides = [1, 1]} : vector<16x384xf32> to vector<16x128xf32>
    %92 = vector.extract_strided_slice %87 {offsets = [0, 256], sizes = [16, 128], strides = [1, 1]} : vector<16x384xf32> to vector<16x128xf32>
    %93 = vector.extract_strided_slice %89 {offsets = [0, 0], sizes = [16, 128], strides = [1, 1]} : vector<16x384xf32> to vector<16x128xf32>
    %94 = vector.extract_strided_slice %89 {offsets = [0, 128], sizes = [16, 128], strides = [1, 1]} : vector<16x384xf32> to vector<16x128xf32>
    %95 = vector.extract_strided_slice %89 {offsets = [0, 256], sizes = [16, 128], strides = [1, 1]} : vector<16x384xf32> to vector<16x128xf32>
    %96 = arith.addf %90, %93 : vector<16x128xf32>
    %97 = arith.negf %96 : vector<16x128xf32>
    %98 = math.exp %97 : vector<16x128xf32>
    %cst_25 = arith.constant 1.000000e+00 : f32
    %99 = vector.broadcast %cst_25 : f32 to vector<16x128xf32>
    %100 = arith.addf %99, %98 : vector<16x128xf32>
    %101 = arith.divf %99, %100 : vector<16x128xf32>
    %102 = arith.addf %91, %94 : vector<16x128xf32>
    %103 = arith.negf %102 : vector<16x128xf32>
    %104 = math.exp %103 : vector<16x128xf32>
    %cst_26 = arith.constant 1.000000e+00 : f32
    %105 = vector.broadcast %cst_26 : f32 to vector<16x128xf32>
    %106 = arith.addf %105, %104 : vector<16x128xf32>
    %107 = arith.divf %105, %106 : vector<16x128xf32>
    %108 = vector.broadcast %4 : vector<1x128xf32> to vector<16x128xf32>
    %109 = arith.addf %95, %108 : vector<16x128xf32>
    %110 = arith.mulf %101, %109 : vector<16x128xf32>
    %111 = arith.addf %92, %110 : vector<16x128xf32>
    %112 = math.tanh %111 : vector<16x128xf32>
    %cst_27 = arith.constant 1.000000e+00 : f32
    %113 = vector.broadcast %cst_27 : f32 to vector<16x128xf32>
    %114 = arith.subf %113, %107 : vector<16x128xf32>
    %115 = arith.mulf %114, %112 : vector<16x128xf32>
    %116 = arith.mulf %107, %78 : vector<16x128xf32>
    %117 = arith.addf %115, %116 : vector<16x128xf32>
    %118 = arith.truncf %117 : vector<16x128xf32> to vector<16x128xbf16>
    %119 = arith.index_cast %c2_i32 : i32 to index
    %c0_28 = arith.constant 0 : index
    %c0_29 = arith.constant 0 : index
    %120 = vector.load %arg6[%119, %c0_28, %c0_29] : memref<8x16x128xbf16, #tpu.memory_space<vmem>>, vector<1x16x128xbf16>
    %121 = vector.shape_cast %120 : vector<1x16x128xbf16> to vector<16x128xbf16>
    %122 = vector.shape_cast %118 : vector<16x128xbf16> to vector<1x16x128xbf16>
    tpu.vector_store %arg6[%119, %c0_28, %c0_29], %122 {strides = array<i32>} : memref<8x16x128xbf16, #tpu.memory_space<vmem>>, vector<1x16x128xbf16>,
    %c3_i32 = arith.constant 3 : i32
    %123 = arith.index_cast %c3_i32 : i32 to index
    %c0_30 = arith.constant 0 : index
    %c0_31 = arith.constant 0 : index
    %124 = vector.load %arg2[%123, %c0_30, %c0_31] : memref<8x16x384xbf16, #tpu.memory_space<vmem>>, vector<1x16x384xbf16>
    %125 = vector.shape_cast %124 : vector<1x16x384xbf16> to vector<16x384xbf16>
    %126 = arith.extf %125 : vector<16x384xbf16> to vector<16x384xf32>
    %127 = arith.truncf %117 : vector<16x128xf32> to vector<16x128xbf16>
    %cst_32 = arith.constant dense<0.000000e+00> : vector<16x384xf32>
    %128 = tpu.matmul %127, %3, %cst_32 {dimension_numbers = #tpu.dot_dimension_numbers<[1], [0], [0], [1], [0, 0, 1, 1], [], []>} : vector<16x128xbf16>, vector<128x384xbf16>, vector<16x384xf32> -> vector<16x384xf32>
    %129 = vector.extract_strided_slice %126 {offsets = [0, 0], sizes = [16, 128], strides = [1, 1]} : vector<16x384xf32> to vector<16x128xf32>
    %130 = vector.extract_strided_slice %126 {offsets = [0, 128], sizes = [16, 128], strides = [1, 1]} : vector<16x384xf32> to vector<16x128xf32>
    %131 = vector.extract_strided_slice %126 {offsets = [0, 256], sizes = [16, 128], strides = [1, 1]} : vector<16x384xf32> to vector<16x128xf32>
    %132 = vector.extract_strided_slice %128 {offsets = [0, 0], sizes = [16, 128], strides = [1, 1]} : vector<16x384xf32> to vector<16x128xf32>
    %133 = vector.extract_strided_slice %128 {offsets = [0, 128], sizes = [16, 128], strides = [1, 1]} : vector<16x384xf32> to vector<16x128xf32>
    %134 = vector.extract_strided_slice %128 {offsets = [0, 256], sizes = [16, 128], strides = [1, 1]} : vector<16x384xf32> to vector<16x128xf32>
    %135 = arith.addf %129, %132 : vector<16x128xf32>
    %136 = arith.negf %135 : vector<16x128xf32>
    %137 = math.exp %136 : vector<16x128xf32>
    %cst_33 = arith.constant 1.000000e+00 : f32
    %138 = vector.broadcast %cst_33 : f32 to vector<16x128xf32>
    %139 = arith.addf %138, %137 : vector<16x128xf32>
    %140 = arith.divf %138, %139 : vector<16x128xf32>
    %141 = arith.addf %130, %133 : vector<16x128xf32>
    %142 = arith.negf %141 : vector<16x128xf32>
    %143 = math.exp %142 : vector<16x128xf32>
    %cst_34 = arith.constant 1.000000e+00 : f32
    %144 = vector.broadcast %cst_34 : f32 to vector<16x128xf32>
    %145 = arith.addf %144, %143 : vector<16x128xf32>
    %146 = arith.divf %144, %145 : vector<16x128xf32>
    %147 = vector.broadcast %4 : vector<1x128xf32> to vector<16x128xf32>
    %148 = arith.addf %134, %147 : vector<16x128xf32>
    %149 = arith.mulf %140, %148 : vector<16x128xf32>
    %150 = arith.addf %131, %149 : vector<16x128xf32>
    %151 = math.tanh %150 : vector<16x128xf32>
    %cst_35 = arith.constant 1.000000e+00 : f32
    %152 = vector.broadcast %cst_35 : f32 to vector<16x128xf32>
    %153 = arith.subf %152, %146 : vector<16x128xf32>
    %154 = arith.mulf %153, %151 : vector<16x128xf32>
    %155 = arith.mulf %146, %117 : vector<16x128xf32>
    %156 = arith.addf %154, %155 : vector<16x128xf32>
    %157 = arith.truncf %156 : vector<16x128xf32> to vector<16x128xbf16>
    %158 = arith.index_cast %c3_i32 : i32 to index
    %c0_36 = arith.constant 0 : index
    %c0_37 = arith.constant 0 : index
    %159 = vector.load %arg6[%158, %c0_36, %c0_37] : memref<8x16x128xbf16, #tpu.memory_space<vmem>>, vector<1x16x128xbf16>
    %160 = vector.shape_cast %159 : vector<1x16x128xbf16> to vector<16x128xbf16>
    %161 = vector.shape_cast %157 : vector<16x128xbf16> to vector<1x16x128xbf16>
    tpu.vector_store %arg6[%158, %c0_36, %c0_37], %161 {strides = array<i32>} : memref<8x16x128xbf16, #tpu.memory_space<vmem>>, vector<1x16x128xbf16>,
    %c4_i32 = arith.constant 4 : i32
    %162 = arith.index_cast %c4_i32 : i32 to index
    %c0_38 = arith.constant 0 : index
    %c0_39 = arith.constant 0 : index
    %163 = vector.load %arg2[%162, %c0_38, %c0_39] : memref<8x16x384xbf16, #tpu.memory_space<vmem>>, vector<1x16x384xbf16>
    %164 = vector.shape_cast %163 : vector<1x16x384xbf16> to vector<16x384xbf16>
    %165 = arith.extf %164 : vector<16x384xbf16> to vector<16x384xf32>
    %166 = arith.truncf %156 : vector<16x128xf32> to vector<16x128xbf16>
    %cst_40 = arith.constant dense<0.000000e+00> : vector<16x384xf32>
    %167 = tpu.matmul %166, %3, %cst_40 {dimension_numbers = #tpu.dot_dimension_numbers<[1], [0], [0], [1], [0, 0, 1, 1], [], []>} : vector<16x128xbf16>, vector<128x384xbf16>, vector<16x384xf32> -> vector<16x384xf32>
    %168 = vector.extract_strided_slice %165 {offsets = [0, 0], sizes = [16, 128], strides = [1, 1]} : vector<16x384xf32> to vector<16x128xf32>
    %169 = vector.extract_strided_slice %165 {offsets = [0, 128], sizes = [16, 128], strides = [1, 1]} : vector<16x384xf32> to vector<16x128xf32>
    %170 = vector.extract_strided_slice %165 {offsets = [0, 256], sizes = [16, 128], strides = [1, 1]} : vector<16x384xf32> to vector<16x128xf32>
    %171 = vector.extract_strided_slice %167 {offsets = [0, 0], sizes = [16, 128], strides = [1, 1]} : vector<16x384xf32> to vector<16x128xf32>
    %172 = vector.extract_strided_slice %167 {offsets = [0, 128], sizes = [16, 128], strides = [1, 1]} : vector<16x384xf32> to vector<16x128xf32>
    %173 = vector.extract_strided_slice %167 {offsets = [0, 256], sizes = [16, 128], strides = [1, 1]} : vector<16x384xf32> to vector<16x128xf32>
    %174 = arith.addf %168, %171 : vector<16x128xf32>
    %175 = arith.negf %174 : vector<16x128xf32>
    %176 = math.exp %175 : vector<16x128xf32>
    %cst_41 = arith.constant 1.000000e+00 : f32
    %177 = vector.broadcast %cst_41 : f32 to vector<16x128xf32>
    %178 = arith.addf %177, %176 : vector<16x128xf32>
    %179 = arith.divf %177, %178 : vector<16x128xf32>
    %180 = arith.addf %169, %172 : vector<16x128xf32>
    %181 = arith.negf %180 : vector<16x128xf32>
    %182 = math.exp %181 : vector<16x128xf32>
    %cst_42 = arith.constant 1.000000e+00 : f32
    %183 = vector.broadcast %cst_42 : f32 to vector<16x128xf32>
    %184 = arith.addf %183, %182 : vector<16x128xf32>
    %185 = arith.divf %183, %184 : vector<16x128xf32>
    %186 = vector.broadcast %4 : vector<1x128xf32> to vector<16x128xf32>
    %187 = arith.addf %173, %186 : vector<16x128xf32>
    %188 = arith.mulf %179, %187 : vector<16x128xf32>
    %189 = arith.addf %170, %188 : vector<16x128xf32>
    %190 = math.tanh %189 : vector<16x128xf32>
    %cst_43 = arith.constant 1.000000e+00 : f32
    %191 = vector.broadcast %cst_43 : f32 to vector<16x128xf32>
    %192 = arith.subf %191, %185 : vector<16x128xf32>
    %193 = arith.mulf %192, %190 : vector<16x128xf32>
    %194 = arith.mulf %185, %156 : vector<16x128xf32>
    %195 = arith.addf %193, %194 : vector<16x128xf32>
    %196 = arith.truncf %195 : vector<16x128xf32> to vector<16x128xbf16>
    %197 = arith.index_cast %c4_i32 : i32 to index
    %c0_44 = arith.constant 0 : index
    %c0_45 = arith.constant 0 : index
    %198 = vector.load %arg6[%197, %c0_44, %c0_45] : memref<8x16x128xbf16, #tpu.memory_space<vmem>>, vector<1x16x128xbf16>
    %199 = vector.shape_cast %198 : vector<1x16x128xbf16> to vector<16x128xbf16>
    %200 = vector.shape_cast %196 : vector<16x128xbf16> to vector<1x16x128xbf16>
    tpu.vector_store %arg6[%197, %c0_44, %c0_45], %200 {strides = array<i32>} : memref<8x16x128xbf16, #tpu.memory_space<vmem>>, vector<1x16x128xbf16>,
    %c5_i32 = arith.constant 5 : i32
    %201 = arith.index_cast %c5_i32 : i32 to index
    %c0_46 = arith.constant 0 : index
    %c0_47 = arith.constant 0 : index
    %202 = vector.load %arg2[%201, %c0_46, %c0_47] : memref<8x16x384xbf16, #tpu.memory_space<vmem>>, vector<1x16x384xbf16>
    %203 = vector.shape_cast %202 : vector<1x16x384xbf16> to vector<16x384xbf16>
    %204 = arith.extf %203 : vector<16x384xbf16> to vector<16x384xf32>
    %205 = arith.truncf %195 : vector<16x128xf32> to vector<16x128xbf16>
    %cst_48 = arith.constant dense<0.000000e+00> : vector<16x384xf32>
    %206 = tpu.matmul %205, %3, %cst_48 {dimension_numbers = #tpu.dot_dimension_numbers<[1], [0], [0], [1], [0, 0, 1, 1], [], []>} : vector<16x128xbf16>, vector<128x384xbf16>, vector<16x384xf32> -> vector<16x384xf32>
    %207 = vector.extract_strided_slice %204 {offsets = [0, 0], sizes = [16, 128], strides = [1, 1]} : vector<16x384xf32> to vector<16x128xf32>
    %208 = vector.extract_strided_slice %204 {offsets = [0, 128], sizes = [16, 128], strides = [1, 1]} : vector<16x384xf32> to vector<16x128xf32>
    %209 = vector.extract_strided_slice %204 {offsets = [0, 256], sizes = [16, 128], strides = [1, 1]} : vector<16x384xf32> to vector<16x128xf32>
    %210 = vector.extract_strided_slice %206 {offsets = [0, 0], sizes = [16, 128], strides = [1, 1]} : vector<16x384xf32> to vector<16x128xf32>
    %211 = vector.extract_strided_slice %206 {offsets = [0, 128], sizes = [16, 128], strides = [1, 1]} : vector<16x384xf32> to vector<16x128xf32>
    %212 = vector.extract_strided_slice %206 {offsets = [0, 256], sizes = [16, 128], strides = [1, 1]} : vector<16x384xf32> to vector<16x128xf32>
    %213 = arith.addf %207, %210 : vector<16x128xf32>
    %214 = arith.negf %213 : vector<16x128xf32>
    %215 = math.exp %214 : vector<16x128xf32>
    %cst_49 = arith.constant 1.000000e+00 : f32
    %216 = vector.broadcast %cst_49 : f32 to vector<16x128xf32>
    %217 = arith.addf %216, %215 : vector<16x128xf32>
    %218 = arith.divf %216, %217 : vector<16x128xf32>
    %219 = arith.addf %208, %211 : vector<16x128xf32>
    %220 = arith.negf %219 : vector<16x128xf32>
    %221 = math.exp %220 : vector<16x128xf32>
    %cst_50 = arith.constant 1.000000e+00 : f32
    %222 = vector.broadcast %cst_50 : f32 to vector<16x128xf32>
    %223 = arith.addf %222, %221 : vector<16x128xf32>
    %224 = arith.divf %222, %223 : vector<16x128xf32>
    %225 = vector.broadcast %4 : vector<1x128xf32> to vector<16x128xf32>
    %226 = arith.addf %212, %225 : vector<16x128xf32>
    %227 = arith.mulf %218, %226 : vector<16x128xf32>
    %228 = arith.addf %209, %227 : vector<16x128xf32>
    %229 = math.tanh %228 : vector<16x128xf32>
    %cst_51 = arith.constant 1.000000e+00 : f32
    %230 = vector.broadcast %cst_51 : f32 to vector<16x128xf32>
    %231 = arith.subf %230, %224 : vector<16x128xf32>
    %232 = arith.mulf %231, %229 : vector<16x128xf32>
    %233 = arith.mulf %224, %195 : vector<16x128xf32>
    %234 = arith.addf %232, %233 : vector<16x128xf32>
    %235 = arith.truncf %234 : vector<16x128xf32> to vector<16x128xbf16>
    %236 = arith.index_cast %c5_i32 : i32 to index
    %c0_52 = arith.constant 0 : index
    %c0_53 = arith.constant 0 : index
    %237 = vector.load %arg6[%236, %c0_52, %c0_53] : memref<8x16x128xbf16, #tpu.memory_space<vmem>>, vector<1x16x128xbf16>
    %238 = vector.shape_cast %237 : vector<1x16x128xbf16> to vector<16x128xbf16>
    %239 = vector.shape_cast %235 : vector<16x128xbf16> to vector<1x16x128xbf16>
    tpu.vector_store %arg6[%236, %c0_52, %c0_53], %239 {strides = array<i32>} : memref<8x16x128xbf16, #tpu.memory_space<vmem>>, vector<1x16x128xbf16>,
    %c6_i32 = arith.constant 6 : i32
    %240 = arith.index_cast %c6_i32 : i32 to index
    %c0_54 = arith.constant 0 : index
    %c0_55 = arith.constant 0 : index
    %241 = vector.load %arg2[%240, %c0_54, %c0_55] : memref<8x16x384xbf16, #tpu.memory_space<vmem>>, vector<1x16x384xbf16>
    %242 = vector.shape_cast %241 : vector<1x16x384xbf16> to vector<16x384xbf16>
    %243 = arith.extf %242 : vector<16x384xbf16> to vector<16x384xf32>
    %244 = arith.truncf %234 : vector<16x128xf32> to vector<16x128xbf16>
    %cst_56 = arith.constant dense<0.000000e+00> : vector<16x384xf32>
    %245 = tpu.matmul %244, %3, %cst_56 {dimension_numbers = #tpu.dot_dimension_numbers<[1], [0], [0], [1], [0, 0, 1, 1], [], []>} : vector<16x128xbf16>, vector<128x384xbf16>, vector<16x384xf32> -> vector<16x384xf32>
    %246 = vector.extract_strided_slice %243 {offsets = [0, 0], sizes = [16, 128], strides = [1, 1]} : vector<16x384xf32> to vector<16x128xf32>
    %247 = vector.extract_strided_slice %243 {offsets = [0, 128], sizes = [16, 128], strides = [1, 1]} : vector<16x384xf32> to vector<16x128xf32>
    %248 = vector.extract_strided_slice %243 {offsets = [0, 256], sizes = [16, 128], strides = [1, 1]} : vector<16x384xf32> to vector<16x128xf32>
    %249 = vector.extract_strided_slice %245 {offsets = [0, 0], sizes = [16, 128], strides = [1, 1]} : vector<16x384xf32> to vector<16x128xf32>
    %250 = vector.extract_strided_slice %245 {offsets = [0, 128], sizes = [16, 128], strides = [1, 1]} : vector<16x384xf32> to vector<16x128xf32>
    %251 = vector.extract_strided_slice %245 {offsets = [0, 256], sizes = [16, 128], strides = [1, 1]} : vector<16x384xf32> to vector<16x128xf32>
    %252 = arith.addf %246, %249 : vector<16x128xf32>
    %253 = arith.negf %252 : vector<16x128xf32>
    %254 = math.exp %253 : vector<16x128xf32>
    %cst_57 = arith.constant 1.000000e+00 : f32
    %255 = vector.broadcast %cst_57 : f32 to vector<16x128xf32>
    %256 = arith.addf %255, %254 : vector<16x128xf32>
    %257 = arith.divf %255, %256 : vector<16x128xf32>
    %258 = arith.addf %247, %250 : vector<16x128xf32>
    %259 = arith.negf %258 : vector<16x128xf32>
    %260 = math.exp %259 : vector<16x128xf32>
    %cst_58 = arith.constant 1.000000e+00 : f32
    %261 = vector.broadcast %cst_58 : f32 to vector<16x128xf32>
    %262 = arith.addf %261, %260 : vector<16x128xf32>
    %263 = arith.divf %261, %262 : vector<16x128xf32>
    %264 = vector.broadcast %4 : vector<1x128xf32> to vector<16x128xf32>
    %265 = arith.addf %251, %264 : vector<16x128xf32>
    %266 = arith.mulf %257, %265 : vector<16x128xf32>
    %267 = arith.addf %248, %266 : vector<16x128xf32>
    %268 = math.tanh %267 : vector<16x128xf32>
    %cst_59 = arith.constant 1.000000e+00 : f32
    %269 = vector.broadcast %cst_59 : f32 to vector<16x128xf32>
    %270 = arith.subf %269, %263 : vector<16x128xf32>
    %271 = arith.mulf %270, %268 : vector<16x128xf32>
    %272 = arith.mulf %263, %234 : vector<16x128xf32>
    %273 = arith.addf %271, %272 : vector<16x128xf32>
    %274 = arith.truncf %273 : vector<16x128xf32> to vector<16x128xbf16>
    %275 = arith.index_cast %c6_i32 : i32 to index
    %c0_60 = arith.constant 0 : index
    %c0_61 = arith.constant 0 : index
    %276 = vector.load %arg6[%275, %c0_60, %c0_61] : memref<8x16x128xbf16, #tpu.memory_space<vmem>>, vector<1x16x128xbf16>
    %277 = vector.shape_cast %276 : vector<1x16x128xbf16> to vector<16x128xbf16>
    %278 = vector.shape_cast %274 : vector<16x128xbf16> to vector<1x16x128xbf16>
    tpu.vector_store %arg6[%275, %c0_60, %c0_61], %278 {strides = array<i32>} : memref<8x16x128xbf16, #tpu.memory_space<vmem>>, vector<1x16x128xbf16>,
    %c7_i32 = arith.constant 7 : i32
    %279 = arith.index_cast %c7_i32 : i32 to index
    %c0_62 = arith.constant 0 : index
    %c0_63 = arith.constant 0 : index
    %280 = vector.load %arg2[%279, %c0_62, %c0_63] : memref<8x16x384xbf16, #tpu.memory_space<vmem>>, vector<1x16x384xbf16>
    %281 = vector.shape_cast %280 : vector<1x16x384xbf16> to vector<16x384xbf16>
    %282 = arith.extf %281 : vector<16x384xbf16> to vector<16x384xf32>
    %283 = arith.truncf %273 : vector<16x128xf32> to vector<16x128xbf16>
    %cst_64 = arith.constant dense<0.000000e+00> : vector<16x384xf32>
    %284 = tpu.matmul %283, %3, %cst_64 {dimension_numbers = #tpu.dot_dimension_numbers<[1], [0], [0], [1], [0, 0, 1, 1], [], []>} : vector<16x128xbf16>, vector<128x384xbf16>, vector<16x384xf32> -> vector<16x384xf32>
    %285 = vector.extract_strided_slice %282 {offsets = [0, 0], sizes = [16, 128], strides = [1, 1]} : vector<16x384xf32> to vector<16x128xf32>
    %286 = vector.extract_strided_slice %282 {offsets = [0, 128], sizes = [16, 128], strides = [1, 1]} : vector<16x384xf32> to vector<16x128xf32>
    %287 = vector.extract_strided_slice %282 {offsets = [0, 256], sizes = [16, 128], strides = [1, 1]} : vector<16x384xf32> to vector<16x128xf32>
    %288 = vector.extract_strided_slice %284 {offsets = [0, 0], sizes = [16, 128], strides = [1, 1]} : vector<16x384xf32> to vector<16x128xf32>
    %289 = vector.extract_strided_slice %284 {offsets = [0, 128], sizes = [16, 128], strides = [1, 1]} : vector<16x384xf32> to vector<16x128xf32>
    %290 = vector.extract_strided_slice %284 {offsets = [0, 256], sizes = [16, 128], strides = [1, 1]} : vector<16x384xf32> to vector<16x128xf32>
    %291 = arith.addf %285, %288 : vector<16x128xf32>
    %292 = arith.negf %291 : vector<16x128xf32>
    %293 = math.exp %292 : vector<16x128xf32>
    %cst_65 = arith.constant 1.000000e+00 : f32
    %294 = vector.broadcast %cst_65 : f32 to vector<16x128xf32>
    %295 = arith.addf %294, %293 : vector<16x128xf32>
    %296 = arith.divf %294, %295 : vector<16x128xf32>
    %297 = arith.addf %286, %289 : vector<16x128xf32>
    %298 = arith.negf %297 : vector<16x128xf32>
    %299 = math.exp %298 : vector<16x128xf32>
    %cst_66 = arith.constant 1.000000e+00 : f32
    %300 = vector.broadcast %cst_66 : f32 to vector<16x128xf32>
    %301 = arith.addf %300, %299 : vector<16x128xf32>
    %302 = arith.divf %300, %301 : vector<16x128xf32>
    %303 = vector.broadcast %4 : vector<1x128xf32> to vector<16x128xf32>
    %304 = arith.addf %290, %303 : vector<16x128xf32>
    %305 = arith.mulf %296, %304 : vector<16x128xf32>
    %306 = arith.addf %287, %305 : vector<16x128xf32>
    %307 = math.tanh %306 : vector<16x128xf32>
    %cst_67 = arith.constant 1.000000e+00 : f32
    %308 = vector.broadcast %cst_67 : f32 to vector<16x128xf32>
    %309 = arith.subf %308, %302 : vector<16x128xf32>
    %310 = arith.mulf %309, %307 : vector<16x128xf32>
    %311 = arith.mulf %302, %273 : vector<16x128xf32>
    %312 = arith.addf %310, %311 : vector<16x128xf32>
    %313 = arith.truncf %312 : vector<16x128xf32> to vector<16x128xbf16>
    %314 = arith.index_cast %c7_i32 : i32 to index
    %c0_68 = arith.constant 0 : index
    %c0_69 = arith.constant 0 : index
    %315 = vector.load %arg6[%314, %c0_68, %c0_69] : memref<8x16x128xbf16, #tpu.memory_space<vmem>>, vector<1x16x128xbf16>
    %316 = vector.shape_cast %315 : vector<1x16x128xbf16> to vector<16x128xbf16>
    %317 = vector.shape_cast %313 : vector<16x128xbf16> to vector<1x16x128xbf16>
    tpu.vector_store %arg6[%314, %c0_68, %c0_69], %317 {strides = array<i32>} : memref<8x16x128xbf16, #tpu.memory_space<vmem>>, vector<1x16x128xbf16>,
    %c8_i32 = arith.constant 8 : i32
    %c0_70 = arith.constant 0 : index
    %c0_71 = arith.constant 0 : index
    %318 = vector.load %arg10[%c0_70, %c0_71] : memref<16x128xf32, #tpu.memory_space<vmem>>, vector<16x128xf32>
    tpu.vector_store %arg10[%c0_70, %c0_71], %312 {strides = array<i32>} : memref<16x128xf32, #tpu.memory_space<vmem>>, vector<16x128xf32>,
    %c0_i32_72 = arith.constant 0 : i32
    %319 = arith.cmpi eq, %arg1, %c0_i32_72 : i32
    %320 = arith.extui %319 : i1 to i32
    %c0_i32_73 = arith.constant 0 : i32
    %321 = arith.cmpi ne, %320, %c0_i32_73 : i32
    scf.if %321 {
      %c0_74 = arith.constant 0 : index
      %c0_75 = arith.constant 0 : index
      %322 = vector.load %arg7[%c0_74, %c0_75] : memref<16x128xf32, #tpu.memory_space<vmem>>, vector<16x128xf32>
      tpu.vector_store %arg7[%c0_74, %c0_75], %312 {strides = array<i32>} : memref<16x128xf32, #tpu.memory_space<vmem>>, vector<16x128xf32>,
    } else {
    }
    return
  }
  func.func @transform_0(%arg0: i32, %arg1: i32) -> (i32, i32, i32) {
    %c0_i32 = arith.constant 0 : i32
    %c0_i32_0 = arith.constant 0 : i32
    return %arg1, %arg0, %c0_i32 : i32, i32, i32
  }
  func.func @transform_1(%arg0: i32, %arg1: i32) -> (i32, i32) {
    %c0_i32 = arith.constant 0 : i32
    %c0_i32_0 = arith.constant 0 : i32
    return %arg0, %c0_i32 : i32, i32
  }
  func.func @transform_3(%arg0: i32, %arg1: i32) -> (i32, i32) {
    %c0_i32 = arith.constant 0 : i32
    %c0_i32_0 = arith.constant 0 : i32
    %c0_i32_1 = arith.constant 0 : i32
    return %c0_i32, %c0_i32_0 : i32, i32
  }
  func.func @transform_4(%arg0: i32, %arg1: i32) -> (i32, i32, i32) {
    %c0_i32 = arith.constant 0 : i32
    %c0_i32_0 = arith.constant 0 : i32
    return %arg1, %arg0, %c0_i32 : i32, i32, i32
  }
  func.func @transform_5(%arg0: i32, %arg1: i32) -> (i32, i32) {
    %c0_i32 = arith.constant 0 : i32
    %c0_i32_0 = arith.constant 0 : i32
    return %arg0, %c0_i32 : i32, i32
  }
}

</mosaic_0001>

<llo_original>
// kernel: tpu_custom_call.1
$region0: #{tpu_custom_call.1}
  #allocation0 [shape = 'u32[]', space=smem, size = 0x4, offset = 0x4, fixed_abs, tag = 'smem constant byte address 0x4 - core index']
  #allocation1 [shape = 'u32[144,128]{1,0:T(1,128)}', space=vmem, size = 0x12000, scoped, tag = 'internal scratch']
  #allocation2 [shape = 'bf16[128,384]{1,0:T(16,128)(2,1)}', space=vmem, size = 0x18000, scoped, tag = 'scratch operand']
  #allocation3 [shape = 's32[1]{0}', space=sflag, size = 0x4, scoped, tag = 'scratch operand']
  #allocation4 [shape = 'f32[16,128]{1,0:T(8,128)}', space=vmem, size = 0x2000, scoped, tag = 'scratch operand']
  #allocation14 [shape = 's32[]', space=sflag, size = 0x4, offset = 0, fixed_abs, tag = 'sflag constant byte address 0x0 - dummy sync flag']
  %s0 = inlined_call_operand.hbm [shape: bf16[8,16,384], index: 0, kind: input, shape index: {}]
  %s1 = inlined_call_operand.hbm [shape: f32[16,128], index: 1, kind: input, shape index: {}]
  %s2 = inlined_call_operand.hbm [shape: bf16[128,384], index: 2, kind: input, shape index: {}]
  %s3 = inlined_call_operand.hbm [shape: f32[1,128], index: 3, kind: input, shape index: {}]
  %s4 = inlined_call_operand.hbm [shape: bf16[8,16,128], index: 4, kind: output, shape index: {0}]
  %s5 = inlined_call_operand.hbm [shape: f32[16,128], index: 5, kind: output, shape index: {1}]
  %6 = xla_tuple %s4, %s5
  %s7 = sld [smem:[#allocation0]]
  $region50: #{tpu_custom_call.1} parent=0
    _
  %s9 = ssub.s32 1, %s7
  %s10 = scalar_select 0, %s9, %s7
  $region1: #{tpu_custom_call.1} parent=0
    #allocation5 [shape = 'u8[98304]{0}', space=vmem, size = 0x18000, scoped, tag = 'input window, operand 0, single buffered']
    #allocation6 [shape = 's32[1]{0}', space=sflag, size = 0x4, scoped, tag = 'scoped memory for tpu_custom_call.1']
    #allocation7 [shape = 's32[1]{0}', space=sflag, size = 0x4, scoped, tag = 'scoped memory for tpu_custom_call.1']
    #allocation8 [shape = 'u8[8192]{0}', space=vmem, size = 0x2000, scoped, tag = 'input window, operand 1, single buffered']
    #allocation9 [shape = 's32[1]{0}', space=sflag, size = 0x4, scoped, tag = 'scoped memory for tpu_custom_call.1']
    #allocation10 [shape = 'u8[512]{0}', space=vmem, size = 0x400, scoped, tag = 'input window, operand 3, single buffered']
    #allocation11 [shape = 'u8[32768]{0}', space=vmem, size = 0x8000, scoped, tag = 'output window, operand 0, single buffered']
    #allocation12 [shape = 'u8[8192]{0}', space=vmem, size = 0x2000, scoped, tag = 'output window, operand 1, single buffered']
    #allocation13 [shape = 's32[1]{0}', space=sflag, size = 0x4, scoped, tag = 'scoped memory for tpu_custom_call.1']
    %11 = vsyncpa [#allocation6], 0
    %12 = vsyncpa [#allocation9], 0
    %13 = vsyncpa [#allocation7], 0
    %14 = vsyncpa [#allocation13], 0
    // Predicated region
    $region2: #{tpu_custom_call.1} parent=1 // pred_check
      _
    $region3: #{tpu_custom_call.1} parent=1 // pred_check_branch
      %16 = sbr.rel (0) target = $region5
    $region4: #{tpu_custom_call.1} parent=1 // pred_region
      %s18 = ssub.s32 3072, 3072
      %19 = vsyncadd [#allocation6], %s18
      %s20 = sshll.u32 [#allocation5], 4
      %s21 = int_to_ptr.vmem [resolvable:$true] %s20
      %26 = dma.hbm_to_vmem [thread:$0]  %s0, 3072, %s21, [#allocation6], 192, 192, 12
    $region5: #{tpu_custom_call.1} parent=1 // pred_fallthru
      _
    // Predicated region
    $region6: #{tpu_custom_call.1} parent=1 // pred_check
      _
    $region7: #{tpu_custom_call.1} parent=1 // pred_check_branch
      %28 = sbr.rel (0) target = $region9
    $region8: #{tpu_custom_call.1} parent=1 // pred_region
      %s30 = ssub.s32 256, 256
      %31 = vsyncadd [#allocation9], %s30
      %s32 = sshll.u32 [#allocation8], 4
      %s33 = int_to_ptr.vmem [resolvable:$true] %s32
      %38 = dma.hbm_to_vmem [thread:$0]  %s1, 256, %s33, [#allocation9], 128, 128, 8
    $region9: #{tpu_custom_call.1} parent=1 // pred_fallthru
      _
    // Predicated region
    $region10: #{tpu_custom_call.1} parent=1 // pred_check
      _
    $region11: #{tpu_custom_call.1} parent=1 // pred_check_branch
      %40 = sbr.rel (0) target = $region13
    $region12: #{tpu_custom_call.1} parent=1 // pred_region
      %s42 = ssub.s32 16, 16
      %43 = vsyncadd [#allocation9], %s42
      %s45 = sshll.u32 [#allocation10], 4
      %s46 = int_to_ptr.vmem [resolvable:$true] %s45
      %48 = dma.hbm_to_vmem [thread:$0]  %s3, 16, %s46, [#allocation9]
    $region13: #{tpu_custom_call.1} parent=1 // pred_fallthru
      _
    // Predicated region
    $region14: #{tpu_custom_call.1} parent=1 // pred_check
      _
    $region15: #{tpu_custom_call.1} parent=1 // pred_check_branch
      %50 = sbr.rel (0) target = $region17
    $region16: #{tpu_custom_call.1} parent=1 // pred_region
      %51 = dma.done [#allocation6], 3072
    $region17: #{tpu_custom_call.1} parent=1 // pred_fallthru
      _
    // Predicated region
    $region18: #{tpu_custom_call.1} parent=1 // pred_check
      _
    $region19: #{tpu_custom_call.1} parent=1 // pred_check_branch
      %53 = sbr.rel (0) target = $region21
    $region20: #{tpu_custom_call.1} parent=1 // pred_region
      %54 = dma.done [#allocation9], 256
    $region21: #{tpu_custom_call.1} parent=1 // pred_fallthru
      _
    // Predicated region
    $region22: #{tpu_custom_call.1} parent=1 // pred_check
      _
    $region23: #{tpu_custom_call.1} parent=1 // pred_check_branch
      %56 = sbr.rel (0) target = $region25
    $region24: #{tpu_custom_call.1} parent=1 // pred_region
      %57 = dma.done [#allocation9], 16
    $region25: #{tpu_custom_call.1} parent=1 // pred_fallthru
      _
    %p59 = scmp.eq.s32.totalorder 0, 0
    // Predicated region
    $region26: #{tpu_custom_call.1} parent=1 // pred_check
      %p60 = pneg %p59
    $region27: #{tpu_custom_call.1} parent=1 // pred_check_branch
      %62 = sbr.rel (%p60) target = $region29
    $region28: #{tpu_custom_call.1} parent=1 // pred_region
      #allocation15 [shape = 'u32[9]{0}', space=smem, size = 0x24, scoped, tag = 'DMA stride descriptor']
      %s64 = sshll.u32 1, 14
      %s65 = sxor.u32 4294967295, %s64
      %s67 = sld [smem:[#allocation0]]
      %s68 = sadd.s32 2, %s67
      %s70 = sshll.u32 7, 26
      %s71 = sxor.u32 4294967295, %s70
      %s72 = sand.u32 0, %s71
      %s73 = sshll.u32 %s68, 26
      %s74 = sor.u32 %s72, %s73
      %s75 = sshll.u32 [#allocation2], 4
      %s76 = int_to_ptr.vmem [resolvable:$true] %s75
      %79 = sst [smem:[#allocation15]] 384
      %s80 = scalar_lea.smem [#allocation15], 1
      %81 = sst [smem:[%s80]] 384
      %s82 = scalar_lea.smem [#allocation15], 2
      %83 = sst [smem:[%s82]] 3
      %s84 = scalar_lea.smem [#allocation15], 3
      %85 = sst [smem:[%s84]] 64
      %s86 = scalar_lea.smem [#allocation15], 4
      %87 = sst [smem:[%s86]] 128
      %s88 = scalar_lea.smem [#allocation15], 5
      %89 = sst [smem:[%s88]] 2
      %s90 = scalar_lea.smem [#allocation15], 6
      %91 = sst [smem:[%s90]] 192
      %s92 = scalar_lea.smem [#allocation15], 7
      %93 = sst [smem:[%s92]] 64
      %s94 = scalar_lea.smem [#allocation15], 8
      %95 = sst [smem:[%s94]] 4
      %97 = dma.general %s2, 3072, %s76, [#allocation3], [#allocation14], [#allocation15], %s74, 0
      %s98 = smul.u32 4, 16
      %s99 = smul.u32 %s98, 3
      %s100 = sshll.u32 %s99, 4
      %101 = dma.done [#allocation3], %s100
      %v102 = vld [vmem:[#allocation8] sm:$0xff]
      %v103 = vld [vmem:[#allocation8 + $0x8] sm:$0xff]
      %104 = vst [vmem:[#allocation4] sm:$0xff] %v102
      %105 = vst [vmem:[#allocation4 + $0x8] sm:$0xff] %v103
    $region29: #{tpu_custom_call.1} parent=1 // pred_fallthru
      _
    %v106 = vld [vmem:[#allocation2] sm:$0xff]
    %v107 = vld [vmem:[#allocation2 + $0x8] sm:$0xff]
    %v108 = vld [vmem:[#allocation2 + $0x10] sm:$0xff]
    %v109 = vld [vmem:[#allocation2 + $0x18] sm:$0xff]
    %v110 = vld [vmem:[#allocation2 + $0x20] sm:$0xff]
    %v111 = vld [vmem:[#allocation2 + $0x28] sm:$0xff]
    %v112 = vld [vmem:[#allocation2 + $0x30] sm:$0xff]
    %v113 = vld [vmem:[#allocation2 + $0x38] sm:$0xff]
    %v114 = vld [vmem:[#allocation2 + $0x40] sm:$0xff]
    %v115 = vld [vmem:[#allocation2 + $0x48] sm:$0xff]
    %v116 = vld [vmem:[#allocation2 + $0x50] sm:$0xff]
    %v117 = vld [vmem:[#allocation2 + $0x58] sm:$0xff]
    %v118 = vld [vmem:[#allocation2 + $0x60] sm:$0xff]
    %v119 = vld [vmem:[#allocation2 + $0x68] sm:$0xff]
    %v120 = vld [vmem:[#allocation2 + $0x70] sm:$0xff]
    %v121 = vld [vmem:[#allocation2 + $0x78] sm:$0xff]
    %v122 = vld [vmem:[#allocation2 + $0x80] sm:$0xff]
    %v123 = vld [vmem:[#allocation2 + $0x88] sm:$0xff]
    %v124 = vld [vmem:[#allocation2 + $0x90] sm:$0xff]
    %v125 = vld [vmem:[#allocation2 + $0x98] sm:$0xff]
    %v126 = vld [vmem:[#allocation2 + $0xa0] sm:$0xff]
    %v127 = vld [vmem:[#allocation2 + $0xa8] sm:$0xff]
    %v128 = vld [vmem:[#allocation2 + $0xb0] sm:$0xff]
    %v129 = vld [vmem:[#allocation2 + $0xb8] sm:$0xff]
    %v130 = vld [vmem:[#allocation10] sm:$0x1]
    %v131 = vld [vmem:[#allocation4] sm:$0xff]
    %v132 = vld [vmem:[#allocation4 + $0x8] sm:$0xff]
    %v133 = vld [vmem:[#allocation5] sm:$0xff]
    %v134 = vld [vmem:[#allocation5 + $0x8] sm:$0xf]
    %v135 = vld [vmem:[#allocation5 + $0xc] sm:$0xff]
    %v136 = vld [vmem:[#allocation5 + $0x14] sm:$0xf]
    %v137 = vunpack.c.l.bf16 %v133
    %v138 = vunpack.c.h.bf16 %v133
    %v139 = vunpack.c.l.bf16 %v134
    %v140 = vunpack.c.l.bf16 %v135
    %v141 = vunpack.c.h.bf16 %v135
    %v142 = vunpack.c.l.bf16 %v136
    %v143 = vpack.c.bf16 %v132, %v131
    %144 = vmatprep.subr.bf16.mxu0 %v107
    %145 = vmatpush1.bf16.msra.mxu0 %v106
    %146 = vmatprep.subr.bf16.mxu0 %v110
    %147 = vmatpush1.bf16.msra.mxu0 %v109
    %148 = vmatprep.subr.bf16.mxu0 %v113
    %149 = vmatpush1.bf16.msra.mxu0 %v112
    %150 = vmatprep.subr.bf16.mxu0 %v116
    %151 = vmatpush1.bf16.msra.mxu0 %v115
    %152 = vmatprep.subr.bf16.mxu0 %v119
    %153 = vmatpush1.bf16.msra.mxu0 %v118
    %154 = vmatprep.subr.bf16.mxu0 %v122
    %155 = vmatpush1.bf16.msra.mxu0 %v121
    %156 = vmatprep.subr.bf16.mxu0 %v125
    %157 = vmatpush1.bf16.msra.mxu0 %v124
    %158 = vmatprep.subr.bf16.mxu0 %v128
    %159 = vmatpush1.bf16.msra.mxu0 %v127
    %160 = vmatprep.subr.bf16.mxu0 0
    %161 = vmatpush1.bf16.msra.mxu0 0
    %162 = vmatprep.subr.bf16.mxu0 0
    %163 = vmatpush1.bf16.msra.mxu0 0
    %164 = vmatprep.subr.bf16.mxu0 0
    %165 = vmatpush1.bf16.msra.mxu0 0
    %166 = vmatprep.subr.bf16.mxu0 0
    %167 = vmatpush1.bf16.msra.mxu0 0
    %168 = vmatprep.subr.bf16.mxu0 0
    %169 = vmatpush1.bf16.msra.mxu0 0
    %170 = vmatprep.subr.bf16.mxu0 0
    %171 = vmatpush1.bf16.msra.mxu0 0
    %172 = vmatprep.subr.bf16.mxu0 0
    %173 = vmatpush1.bf16.msra.mxu0 0
    %174 = vmatprep.subr.bf16.mxu0 0
    %175 = vmatpush1.bf16.msra.mxu0 0
    %176 = vmatprep.mubr.bf16.mxu0 0
    %177 = vmatmul.mubr.bf16.gmra.mrb[0].mxu0 %v143
    %v178 = vpop.f32.mrb[0].mxu0
    %v179 = vadd.f32 0.0, %v178
    %v180 = vpop.f32.mrb[0].mxu0
    %v181 = vadd.f32 0.0, %v180
    %v182 = vpop.f32.mrb[0].mxu0
    %v183 = vadd.f32 0.0, %v182
    %v184 = vpop.f32.mrb[0].mxu0
    %v185 = vadd.f32 0.0, %v184
    %186 = vdwg.mxu0
    %187 = vmatprep.subr.bf16.mxu0 0
    %188 = vmatpush1.bf16.msra.mxu0 %v108
    %189 = vmatprep.subr.bf16.mxu0 0
    %190 = vmatpush1.bf16.msra.mxu0 %v111
    %191 = vmatprep.subr.bf16.mxu0 0
    %192 = vmatpush1.bf16.msra.mxu0 %v114
    %193 = vmatprep.subr.bf16.mxu0 0
    %194 = vmatpush1.bf16.msra.mxu0 %v117
    %195 = vmatprep.subr.bf16.mxu0 0
    %196 = vmatpush1.bf16.msra.mxu0 %v120
    %197 = vmatprep.subr.bf16.mxu0 0
    %198 = vmatpush1.bf16.msra.mxu0 %v123
    %199 = vmatprep.subr.bf16.mxu0 0
    %200 = vmatpush1.bf16.msra.mxu0 %v126
    %201 = vmatprep.subr.bf16.mxu0 0
    %202 = vmatpush1.bf16.msra.mxu0 %v129
    %203 = vmatprep.subr.bf16.mxu0 0
    %204 = vmatpush1.bf16.msra.mxu0 0
    %205 = vmatprep.subr.bf16.mxu0 0
    %206 = vmatpush1.bf16.msra.mxu0 0
    %207 = vmatprep.subr.bf16.mxu0 0
    %208 = vmatpush1.bf16.msra.mxu0 0
    %209 = vmatprep.subr.bf16.mxu0 0
    %210 = vmatpush1.bf16.msra.mxu0 0
    %211 = vmatprep.subr.bf16.mxu0 0
    %212 = vmatpush1.bf16.msra.mxu0 0
    %213 = vmatprep.subr.bf16.mxu0 0
    %214 = vmatpush1.bf16.msra.mxu0 0
    %215 = vmatprep.subr.bf16.mxu0 0
    %216 = vmatpush1.bf16.msra.mxu0 0
    %217 = vmatprep.subr.bf16.mxu0 0
    %218 = vmatpush1.bf16.msra.mxu0 0
    %219 = vmatprep.mubr.bf16.mxu0 0
    %220 = vmatmul.mubr.bf16.gmra.mrb[0].mxu0 %v143
    %v221 = vpop.f32.mrb[0].mxu0
    %v222 = vadd.f32 0.0, %v221
    %v223 = vpop.f32.mrb[0].mxu0
    %v224 = vpop.f32.mrb[0].mxu0
    %v225 = vadd.f32 0.0, %v224
    %v226 = vpop.f32.mrb[0].mxu0
    %227 = vdwg.mxu0
    %v228 = vadd.f32 %v137, %v179
    %v229 = vadd.f32 %v140, %v183
    %v230 = vxor.u32 %v228, 2147483648
    %v231 = vxor.u32 %v229, 2147483648
    %v232 = vmul.f32 %v230, 1.442695
    %v233 = vpow.pop %v232
    %v234 = vmul.f32 %v231, 1.442695
    %v235 = vpow.pop %v234
    %v236 = vadd.f32 %v233, 1.0
    %v237 = vadd.f32 %v235, 1.0
    %v238 = vrcp.pop %v236
    %v239 = vmul.f32 1.0, %v238
    %v240 = vrcp.pop %v237
    %v241 = vmul.f32 1.0, %v240
    %v242 = vadd.f32 %v138, %v181
    %v243 = vadd.f32 %v141, %v185
    %v244 = vxor.u32 %v242, 2147483648
    %v245 = vxor.u32 %v243, 2147483648
    %v246 = vmul.f32 %v244, 1.442695
    %v247 = vpow.pop %v246
    %v248 = vmul.f32 %v245, 1.442695
    %v249 = vpow.pop %v248
    %v250 = vadd.f32 %v247, 1.0
    %v251 = vadd.f32 %v249, 1.0
    %v252 = vrcp.pop %v250
    %v253 = vmul.f32 1.0, %v252
    %v254 = vrcp.pop %v251
    %v255 = vmul.f32 1.0, %v254
    %v257 = vlaneseq
    %v258 = vshrl.u32 %v257, 7
    %v259 = vsub.s32 0, %v258
    %v260 = vrot.slane %v130, %v259
    %v262 = vadd.f32 %v222, %v260
    %v263 = vadd.f32 %v225, %v260
    %v264 = vmul.f32 %v239, %v262
    %v265 = vmul.f32 %v241, %v263
    %v266 = vadd.f32 %v139, %v264
    %v267 = vadd.f32 %v142, %v265
    %v268 = vtanh.pop %v266
    %v269 = vtanh.pop %v267
    %v270 = vsub.f32 1.0, %v253
    %v271 = vsub.f32 1.0, %v255
    %v272 = vmul.f32 %v270, %v268
    %v273 = vmul.f32 %v271, %v269
    %v274 = vmul.f32 %v253, %v131
    %v275 = vmul.f32 %v255, %v132
    %v276 = vadd.f32 %v272, %v274
    %v277 = vadd.f32 %v273, %v275
    %v278 = vpack.c.bf16 %v277, %v276
    %v280 = vunpack.c.l.b16 %v278
    %v281 = vunpack.c.h.b16 %v278
    %v282 = vpack.c.b16 %v280, %v280
    %v283 = vpack.c.b16 %v281, %v281
    %286 = vst [vmem:[#allocation11] sm:$0xf] %v282
    %287 = vst [vmem:[#allocation11 + $0x4] sm:$0xf] %v283
    %s288 = scalar_lea.vmem [#allocation5], 24
    %v289 = vld [vmem:[%s288] sm:$0xff]
    %v290 = vld [vmem:[%s288 + $0x8] sm:$0xf]
    %v291 = vld [vmem:[%s288 + $0xc] sm:$0xff]
    %v292 = vld [vmem:[%s288 + $0x14] sm:$0xf]
    %v293 = vunpack.c.l.bf16 %v289
    %v294 = vunpack.c.h.bf16 %v289
    %v295 = vunpack.c.l.bf16 %v290
    %v296 = vunpack.c.l.bf16 %v291
    %v297 = vunpack.c.h.bf16 %v291
    %v298 = vunpack.c.l.bf16 %v292
    %299 = vmatprep.subr.bf16.mxu0 %v107
    %300 = vmatpush1.bf16.msra.mxu0 %v106
    %301 = vmatprep.subr.bf16.mxu0 %v110
    %302 = vmatpush1.bf16.msra.mxu0 %v109
    %303 = vmatprep.subr.bf16.mxu0 %v113
    %304 = vmatpush1.bf16.msra.mxu0 %v112
    %305 = vmatprep.subr.bf16.mxu0 %v116
    %306 = vmatpush1.bf16.msra.mxu0 %v115
    %307 = vmatprep.subr.bf16.mxu0 %v119
    %308 = vmatpush1.bf16.msra.mxu0 %v118
    %309 = vmatprep.subr.bf16.mxu0 %v122
    %310 = vmatpush1.bf16.msra.mxu0 %v121
    %311 = vmatprep.subr.bf16.mxu0 %v125
    %312 = vmatpush1.bf16.msra.mxu0 %v124
    %313 = vmatprep.subr.bf16.mxu0 %v128
    %314 = vmatpush1.bf16.msra.mxu0 %v127
    %315 = vmatprep.subr.bf16.mxu0 0
    %316 = vmatpush1.bf16.msra.mxu0 0
    %317 = vmatprep.subr.bf16.mxu0 0
    %318 = vmatpush1.bf16.msra.mxu0 0
    %319 = vmatprep.subr.bf16.mxu0 0
    %320 = vmatpush1.bf16.msra.mxu0 0
    %321 = vmatprep.subr.bf16.mxu0 0
    %322 = vmatpush1.bf16.msra.mxu0 0
    %323 = vmatprep.subr.bf16.mxu0 0
    %324 = vmatpush1.bf16.msra.mxu0 0
    %325 = vmatprep.subr.bf16.mxu0 0
    %326 = vmatpush1.bf16.msra.mxu0 0
    %327 = vmatprep.subr.bf16.mxu0 0
    %328 = vmatpush1.bf16.msra.mxu0 0
    %329 = vmatprep.subr.bf16.mxu0 0
    %330 = vmatpush1.bf16.msra.mxu0 0
    %331 = vmatprep.mubr.bf16.mxu0 0
    %332 = vmatmul.mubr.bf16.gmra.mrb[0].mxu0 %v278
    %v333 = vpop.f32.mrb[0].mxu0
    %v334 = vadd.f32 0.0, %v333
    %v335 = vpop.f32.mrb[0].mxu0
    %v336 = vadd.f32 0.0, %v335
    %v337 = vpop.f32.mrb[0].mxu0
    %v338 = vadd.f32 0.0, %v337
    %v339 = vpop.f32.mrb[0].mxu0
    %v340 = vadd.f32 0.0, %v339
    %341 = vdwg.mxu0
    %342 = vmatprep.subr.bf16.mxu0 0
    %343 = vmatpush1.bf16.msra.mxu0 %v108
    %344 = vmatprep.subr.bf16.mxu0 0
    %345 = vmatpush1.bf16.msra.mxu0 %v111
    %346 = vmatprep.subr.bf16.mxu0 0
    %347 = vmatpush1.bf16.msra.mxu0 %v114
    %348 = vmatprep.subr.bf16.mxu0 0
    %349 = vmatpush1.bf16.msra.mxu0 %v117
    %350 = vmatprep.subr.bf16.mxu0 0
    %351 = vmatpush1.bf16.msra.mxu0 %v120
    %352 = vmatprep.subr.bf16.mxu0 0
    %353 = vmatpush1.bf16.msra.mxu0 %v123
    %354 = vmatprep.subr.bf16.mxu0 0
    %355 = vmatpush1.bf16.msra.mxu0 %v126
    %356 = vmatprep.subr.bf16.mxu0 0
    %357 = vmatpush1.bf16.msra.mxu0 %v129
    %358 = vmatprep.subr.bf16.mxu0 0
    %359 = vmatpush1.bf16.msra.mxu0 0
    %360 = vmatprep.subr.bf16.mxu0 0
    %361 = vmatpush1.bf16.msra.mxu0 0
    %362 = vmatprep.subr.bf16.mxu0 0
    %363 = vmatpush1.bf16.msra.mxu0 0
    %364 = vmatprep.subr.bf16.mxu0 0
    %365 = vmatpush1.bf16.msra.mxu0 0
    %366 = vmatprep.subr.bf16.mxu0 0
    %367 = vmatpush1.bf16.msra.mxu0 0
    %368 = vmatprep.subr.bf16.mxu0 0
    %369 = vmatpush1.bf16.msra.mxu0 0
    %370 = vmatprep.subr.bf16.mxu0 0
    %371 = vmatpush1.bf16.msra.mxu0 0
    %372 = vmatprep.subr.bf16.mxu0 0
    %373 = vmatpush1.bf16.msra.mxu0 0
    %374 = vmatprep.mubr.bf16.mxu0 0
    %375 = vmatmul.mubr.bf16.gmra.mrb[0].mxu0 %v278
    %v376 = vpop.f32.mrb[0].mxu0
    %v377 = vadd.f32 0.0, %v376
    %v378 = vpop.f32.mrb[0].mxu0
    %v379 = vpop.f32.mrb[0].mxu0
    %v380 = vadd.f32 0.0, %v379
    %v381 = vpop.f32.mrb[0].mxu0
    %382 = vdwg.mxu0
    %v383 = vadd.f32 %v293, %v334
    %v384 = vadd.f32 %v296, %v338
    %v385 = vxor.u32 %v383, 2147483648
    %v386 = vxor.u32 %v384, 2147483648
    %v387 = vmul.f32 %v385, 1.442695
    %v388 = vpow.pop %v387
    %v389 = vmul.f32 %v386, 1.442695
    %v390 = vpow.pop %v389
    %v391 = vadd.f32 %v388, 1.0
    %v392 = vadd.f32 %v390, 1.0
    %v393 = vrcp.pop %v391
    %v394 = vmul.f32 1.0, %v393
    %v395 = vrcp.pop %v392
    %v396 = vmul.f32 1.0, %v395
    %v397 = vadd.f32 %v294, %v336
    %v398 = vadd.f32 %v297, %v340
    %v399 = vxor.u32 %v397, 2147483648
    %v400 = vxor.u32 %v398, 2147483648
    %v401 = vmul.f32 %v399, 1.442695
    %v402 = vpow.pop %v401
    %v403 = vmul.f32 %v400, 1.442695
    %v404 = vpow.pop %v403
    %v405 = vadd.f32 %v402, 1.0
    %v406 = vadd.f32 %v404, 1.0
    %v407 = vrcp.pop %v405
    %v408 = vmul.f32 1.0, %v407
    %v409 = vrcp.pop %v406
    %v410 = vmul.f32 1.0, %v409
    %v411 = vadd.f32 %v377, %v260
    %v412 = vadd.f32 %v380, %v260
    %v413 = vmul.f32 %v394, %v411
    %v414 = vmul.f32 %v396, %v412
    %v415 = vadd.f32 %v295, %v413
    %v416 = vadd.f32 %v298, %v414
    %v417 = vtanh.pop %v415
    %v418 = vtanh.pop %v416
    %v419 = vsub.f32 1.0, %v408
    %v420 = vsub.f32 1.0, %v410
    %v421 = vmul.f32 %v419, %v417
    %v422 = vmul.f32 %v420, %v418
    %v423 = vmul.f32 %v408, %v276
    %v424 = vmul.f32 %v410, %v277
    %v425 = vadd.f32 %v421, %v423
    %v426 = vadd.f32 %v422, %v424
    %v427 = vpack.c.bf16 %v426, %v425
    %v429 = vunpack.c.l.b16 %v427
    %v430 = vunpack.c.h.b16 %v427
    %v431 = vpack.c.b16 %v429, %v429
    %v432 = vpack.c.b16 %v430, %v430
    %s435 = scalar_lea.vmem [#allocation11], 8
    %436 = vst [vmem:[%s435] sm:$0xf] %v431
    %437 = vst [vmem:[%s435 + $0x4] sm:$0xf] %v432
    %s438 = scalar_lea.vmem [#allocation5], 48
    %v439 = vld [vmem:[%s438] sm:$0xff]
    %v440 = vld [vmem:[%s438 + $0x8] sm:$0xf]
    %v441 = vld [vmem:[%s438 + $0xc] sm:$0xff]
    %v442 = vld [vmem:[%s438 + $0x14] sm:$0xf]
    %v443 = vunpack.c.l.bf16 %v439
    %v444 = vunpack.c.h.bf16 %v439
    %v445 = vunpack.c.l.bf16 %v440
    %v446 = vunpack.c.l.bf16 %v441
    %v447 = vunpack.c.h.bf16 %v441
    %v448 = vunpack.c.l.bf16 %v442
    %449 = vmatprep.subr.bf16.mxu0 %v107
    %450 = vmatpush1.bf16.msra.mxu0 %v106
    %451 = vmatprep.subr.bf16.mxu0 %v110
    %452 = vmatpush1.bf16.msra.mxu0 %v109
    %453 = vmatprep.subr.bf16.mxu0 %v113
    %454 = vmatpush1.bf16.msra.mxu0 %v112
    %455 = vmatprep.subr.bf16.mxu0 %v116
    %456 = vmatpush1.bf16.msra.mxu0 %v115
    %457 = vmatprep.subr.bf16.mxu0 %v119
    %458 = vmatpush1.bf16.msra.mxu0 %v118
    %459 = vmatprep.subr.bf16.mxu0 %v122
    %460 = vmatpush1.bf16.msra.mxu0 %v121
    %461 = vmatprep.subr.bf16.mxu0 %v125
    %462 = vmatpush1.bf16.msra.mxu0 %v124
    %463 = vmatprep.subr.bf16.mxu0 %v128
    %464 = vmatpush1.bf16.msra.mxu0 %v127
    %465 = vmatprep.subr.bf16.mxu0 0
    %466 = vmatpush1.bf16.msra.mxu0 0
    %467 = vmatprep.subr.bf16.mxu0 0
    %468 = vmatpush1.bf16.msra.mxu0 0
    %469 = vmatprep.subr.bf16.mxu0 0
    %470 = vmatpush1.bf16.msra.mxu0 0
    %471 = vmatprep.subr.bf16.mxu0 0
    %472 = vmatpush1.bf16.msra.mxu0 0
    %473 = vmatprep.subr.bf16.mxu0 0
    %474 = vmatpush1.bf16.msra.mxu0 0
    %475 = vmatprep.subr.bf16.mxu0 0
    %476 = vmatpush1.bf16.msra.mxu0 0
    %477 = vmatprep.subr.bf16.mxu0 0
    %478 = vmatpush1.bf16.msra.mxu0 0
    %479 = vmatprep.subr.bf16.mxu0 0
    %480 = vmatpush1.bf16.msra.mxu0 0
    %481 = vmatprep.mubr.bf16.mxu0 0
    %482 = vmatmul.mubr.bf16.gmra.mrb[0].mxu0 %v427
    %v483 = vpop.f32.mrb[0].mxu0
    %v484 = vadd.f32 0.0, %v483
    %v485 = vpop.f32.mrb[0].mxu0
    %v486 = vadd.f32 0.0, %v485
    %v487 = vpop.f32.mrb[0].mxu0
    %v488 = vadd.f32 0.0, %v487
    %v489 = vpop.f32.mrb[0].mxu0
    %v490 = vadd.f32 0.0, %v489
    %491 = vdwg.mxu0
    %492 = vmatprep.subr.bf16.mxu0 0
    %493 = vmatpush1.bf16.msra.mxu0 %v108
    %494 = vmatprep.subr.bf16.mxu0 0
    %495 = vmatpush1.bf16.msra.mxu0 %v111
    %496 = vmatprep.subr.bf16.mxu0 0
    %497 = vmatpush1.bf16.msra.mxu0 %v114
    %498 = vmatprep.subr.bf16.mxu0 0
    %499 = vmatpush1.bf16.msra.mxu0 %v117
    %500 = vmatprep.subr.bf16.mxu0 0
    %501 = vmatpush1.bf16.msra.mxu0 %v120
    %502 = vmatprep.subr.bf16.mxu0 0
    %503 = vmatpush1.bf16.msra.mxu0 %v123
    %504 = vmatprep.subr.bf16.mxu0 0
    %505 = vmatpush1.bf16.msra.mxu0 %v126
    %506 = vmatprep.subr.bf16.mxu0 0
    %507 = vmatpush1.bf16.msra.mxu0 %v129
    %508 = vmatprep.subr.bf16.mxu0 0
    %509 = vmatpush1.bf16.msra.mxu0 0
    %510 = vmatprep.subr.bf16.mxu0 0
    %511 = vmatpush1.bf16.msra.mxu0 0
    %512 = vmatprep.subr.bf16.mxu0 0
    %513 = vmatpush1.bf16.msra.mxu0 0
    %514 = vmatprep.subr.bf16.mxu0 0
    %515 = vmatpush1.bf16.msra.mxu0 0
    %516 = vmatprep.subr.bf16.mxu0 0
    %517 = vmatpush1.bf16.msra.mxu0 0
    %518 = vmatprep.subr.bf16.mxu0 0
    %519 = vmatpush1.bf16.msra.mxu0 0
    %520 = vmatprep.subr.bf16.mxu0 0
    %521 = vmatpush1.bf16.msra.mxu0 0
    %522 = vmatprep.subr.bf16.mxu0 0
    %523 = vmatpush1.bf16.msra.mxu0 0
    %524 = vmatprep.mubr.bf16.mxu0 0
    %525 = vmatmul.mubr.bf16.gmra.mrb[0].mxu0 %v427
    %v526 = vpop.f32.mrb[0].mxu0
    %v527 = vadd.f32 0.0, %v526
    %v528 = vpop.f32.mrb[0].mxu0
    %v529 = vpop.f32.mrb[0].mxu0
    %v530 = vadd.f32 0.0, %v529
    %v531 = vpop.f32.mrb[0].mxu0
    %532 = vdwg.mxu0
    %v533 = vadd.f32 %v443, %v484
    %v534 = vadd.f32 %v446, %v488
    %v535 = vxor.u32 %v533, 2147483648
    %v536 = vxor.u32 %v534, 2147483648
    %v537 = vmul.f32 %v535, 1.442695
    %v538 = vpow.pop %v537
    %v539 = vmul.f32 %v536, 1.442695
    %v540 = vpow.pop %v539
    %v541 = vadd.f32 %v538, 1.0
    %v542 = vadd.f32 %v540, 1.0
    %v543 = vrcp.pop %v541
    %v544 = vmul.f32 1.0, %v543
    %v545 = vrcp.pop %v542
    %v546 = vmul.f32 1.0, %v545
    %v547 = vadd.f32 %v444, %v486
    %v548 = vadd.f32 %v447, %v490
    %v549 = vxor.u32 %v547, 2147483648
    %v550 = vxor.u32 %v548, 2147483648
    %v551 = vmul.f32 %v549, 1.442695
    %v552 = vpow.pop %v551
    %v553 = vmul.f32 %v550, 1.442695
    %v554 = vpow.pop %v553
    %v555 = vadd.f32 %v552, 1.0
    %v556 = vadd.f32 %v554, 1.0
    %v557 = vrcp.pop %v555
    %v558 = vmul.f32 1.0, %v557
    %v559 = vrcp.pop %v556
    %v560 = vmul.f32 1.0, %v559
    %v561 = vadd.f32 %v527, %v260
    %v562 = vadd.f32 %v530, %v260
    %v563 = vmul.f32 %v544, %v561
    %v564 = vmul.f32 %v546, %v562
    %v565 = vadd.f32 %v445, %v563
    %v566 = vadd.f32 %v448, %v564
    %v567 = vtanh.pop %v565
    %v568 = vtanh.pop %v566
    %v569 = vsub.f32 1.0, %v558
    %v570 = vsub.f32 1.0, %v560
    %v571 = vmul.f32 %v569, %v567
    %v572 = vmul.f32 %v570, %v568
    %v573 = vmul.f32 %v558, %v425
    %v574 = vmul.f32 %v560, %v426
    %v575 = vadd.f32 %v571, %v573
    %v576 = vadd.f32 %v572, %v574
    %v577 = vpack.c.bf16 %v576, %v575
    %v579 = vunpack.c.l.b16 %v577
    %v580 = vunpack.c.h.b16 %v577
    %v581 = vpack.c.b16 %v579, %v579
    %v582 = vpack.c.b16 %v580, %v580
    %s585 = scalar_lea.vmem [#allocation11], 16
    %586 = vst [vmem:[%s585] sm:$0xf] %v581
    %587 = vst [vmem:[%s585 + $0x4] sm:$0xf] %v582
    %s588 = scalar_lea.vmem [#allocation5], 72
    %v589 = vld [vmem:[%s588] sm:$0xff]
    %v590 = vld [vmem:[%s588 + $0x8] sm:$0xf]
    %v591 = vld [vmem:[%s588 + $0xc] sm:$0xff]
    %v592 = vld [vmem:[%s588 + $0x14] sm:$0xf]
    %v593 = vunpack.c.l.bf16 %v589
    %v594 = vunpack.c.h.bf16 %v589
    %v595 = vunpack.c.l.bf16 %v590
    %v596 = vunpack.c.l.bf16 %v591
    %v597 = vunpack.c.h.bf16 %v591
    %v598 = vunpack.c.l.bf16 %v592
    %599 = vmatprep.subr.bf16.mxu0 %v107
    %600 = vmatpush1.bf16.msra.mxu0 %v106
    %601 = vmatprep.subr.bf16.mxu0 %v110
    %602 = vmatpush1.bf16.msra.mxu0 %v109
    %603 = vmatprep.subr.bf16.mxu0 %v113
    %604 = vmatpush1.bf16.msra.mxu0 %v112
    %605 = vmatprep.subr.bf16.mxu0 %v116
    %606 = vmatpush1.bf16.msra.mxu0 %v115
    %607 = vmatprep.subr.bf16.mxu0 %v119
    %608 = vmatpush1.bf16.msra.mxu0 %v118
    %609 = vmatprep.subr.bf16.mxu0 %v122
    %610 = vmatpush1.bf16.msra.mxu0 %v121
    %611 = vmatprep.subr.bf16.mxu0 %v125
    %612 = vmatpush1.bf16.msra.mxu0 %v124
    %613 = vmatprep.subr.bf16.mxu0 %v128
    %614 = vmatpush1.bf16.msra.mxu0 %v127
    %615 = vmatprep.subr.bf16.mxu0 0
    %616 = vmatpush1.bf16.msra.mxu0 0
    %617 = vmatprep.subr.bf16.mxu0 0
    %618 = vmatpush1.bf16.msra.mxu0 0
    %619 = vmatprep.subr.bf16.mxu0 0
    %620 = vmatpush1.bf16.msra.mxu0 0
    %621 = vmatprep.subr.bf16.mxu0 0
    %622 = vmatpush1.bf16.msra.mxu0 0
    %623 = vmatprep.subr.bf16.mxu0 0
    %624 = vmatpush1.bf16.msra.mxu0 0
    %625 = vmatprep.subr.bf16.mxu0 0
    %626 = vmatpush1.bf16.msra.mxu0 0
    %627 = vmatprep.subr.bf16.mxu0 0
    %628 = vmatpush1.bf16.msra.mxu0 0
    %629 = vmatprep.subr.bf16.mxu0 0
    %630 = vmatpush1.bf16.msra.mxu0 0
    %631 = vmatprep.mubr.bf16.mxu0 0
    %632 = vmatmul.mubr.bf16.gmra.mrb[0].mxu0 %v577
    %v633 = vpop.f32.mrb[0].mxu0
    %v634 = vadd.f32 0.0, %v633
    %v635 = vpop.f32.mrb[0].mxu0
    %v636 = vadd.f32 0.0, %v635
    %v637 = vpop.f32.mrb[0].mxu0
    %v638 = vadd.f32 0.0, %v637
    %v639 = vpop.f32.mrb[0].mxu0
    %v640 = vadd.f32 0.0, %v639
    %641 = vdwg.mxu0
    %642 = vmatprep.subr.bf16.mxu0 0
    %643 = vmatpush1.bf16.msra.mxu0 %v108
    %644 = vmatprep.subr.bf16.mxu0 0
    %645 = vmatpush1.bf16.msra.mxu0 %v111
    %646 = vmatprep.subr.bf16.mxu0 0
    %647 = vmatpush1.bf16.msra.mxu0 %v114
    %648 = vmatprep.subr.bf16.mxu0 0
    %649 = vmatpush1.bf16.msra.mxu0 %v117
    %650 = vmatprep.subr.bf16.mxu0 0
    %651 = vmatpush1.bf16.msra.mxu0 %v120
    %652 = vmatprep.subr.bf16.mxu0 0
    %653 = vmatpush1.bf16.msra.mxu0 %v123
    %654 = vmatprep.subr.bf16.mxu0 0
    %655 = vmatpush1.bf16.msra.mxu0 %v126
    %656 = vmatprep.subr.bf16.mxu0 0
    %657 = vmatpush1.bf16.msra.mxu0 %v129
    %658 = vmatprep.subr.bf16.mxu0 0
    %659 = vmatpush1.bf16.msra.mxu0 0
    %660 = vmatprep.subr.bf16.mxu0 0
    %661 = vmatpush1.bf16.msra.mxu0 0
    %662 = vmatprep.subr.bf16.mxu0 0
    %663 = vmatpush1.bf16.msra.mxu0 0
    %664 = vmatprep.subr.bf16.mxu0 0
    %665 = vmatpush1.bf16.msra.mxu0 0
    %666 = vmatprep.subr.bf16.mxu0 0
    %667 = vmatpush1.bf16.msra.mxu0 0
    %668 = vmatprep.subr.bf16.mxu0 0
    %669 = vmatpush1.bf16.msra.mxu0 0
    %670 = vmatprep.subr.bf16.mxu0 0
    %671 = vmatpush1.bf16.msra.mxu0 0
    %672 = vmatprep.subr.bf16.mxu0 0
    %673 = vmatpush1.bf16.msra.mxu0 0
    %674 = vmatprep.mubr.bf16.mxu0 0
    %675 = vmatmul.mubr.bf16.gmra.mrb[0].mxu0 %v577
    %v676 = vpop.f32.mrb[0].mxu0
    %v677 = vadd.f32 0.0, %v676
    %v678 = vpop.f32.mrb[0].mxu0
    %v679 = vpop.f32.mrb[0].mxu0
    %v680 = vadd.f32 0.0, %v679
    %v681 = vpop.f32.mrb[0].mxu0
    %682 = vdwg.mxu0
    %v683 = vadd.f32 %v593, %v634
    %v684 = vadd.f32 %v596, %v638
    %v685 = vxor.u32 %v683, 2147483648
    %v686 = vxor.u32 %v684, 2147483648
    %v687 = vmul.f32 %v685, 1.442695
    %v688 = vpow.pop %v687
    %v689 = vmul.f32 %v686, 1.442695
    %v690 = vpow.pop %v689
    %v691 = vadd.f32 %v688, 1.0
    %v692 = vadd.f32 %v690, 1.0
    %v693 = vrcp.pop %v691
    %v694 = vmul.f32 1.0, %v693
    %v695 = vrcp.pop %v692
    %v696 = vmul.f32 1.0, %v695
    %v697 = vadd.f32 %v594, %v636
    %v698 = vadd.f32 %v597, %v640
    %v699 = vxor.u32 %v697, 2147483648
    %v700 = vxor.u32 %v698, 2147483648
    %v701 = vmul.f32 %v699, 1.442695
    %v702 = vpow.pop %v701
    %v703 = vmul.f32 %v700, 1.442695
    %v704 = vpow.pop %v703
    %v705 = vadd.f32 %v702, 1.0
    %v706 = vadd.f32 %v704, 1.0
    %v707 = vrcp.pop %v705
    %v708 = vmul.f32 1.0, %v707
    %v709 = vrcp.pop %v706
    %v710 = vmul.f32 1.0, %v709
    %v711 = vadd.f32 %v677, %v260
    %v712 = vadd.f32 %v680, %v260
    %v713 = vmul.f32 %v694, %v711
    %v714 = vmul.f32 %v696, %v712
    %v715 = vadd.f32 %v595, %v713
    %v716 = vadd.f32 %v598, %v714
    %v717 = vtanh.pop %v715
    %v718 = vtanh.pop %v716
    %v719 = vsub.f32 1.0, %v708
    %v720 = vsub.f32 1.0, %v710
    %v721 = vmul.f32 %v719, %v717
    %v722 = vmul.f32 %v720, %v718
    %v723 = vmul.f32 %v708, %v575
    %v724 = vmul.f32 %v710, %v576
    %v725 = vadd.f32 %v721, %v723
    %v726 = vadd.f32 %v722, %v724
    %v727 = vpack.c.bf16 %v726, %v725
    %v729 = vunpack.c.l.b16 %v727
    %v730 = vunpack.c.h.b16 %v727
    %v731 = vpack.c.b16 %v729, %v729
    %v732 = vpack.c.b16 %v730, %v730
    %s735 = scalar_lea.vmem [#allocation11], 24
    %736 = vst [vmem:[%s735] sm:$0xf] %v731
    %737 = vst [vmem:[%s735 + $0x4] sm:$0xf] %v732
    %s738 = scalar_lea.vmem [#allocation5], 96
    %v739 = vld [vmem:[%s738] sm:$0xff]
    %v740 = vld [vmem:[%s738 + $0x8] sm:$0xf]
    %v741 = vld [vmem:[%s738 + $0xc] sm:$0xff]
    %v742 = vld [vmem:[%s738 + $0x14] sm:$0xf]
    %v743 = vunpack.c.l.bf16 %v739
    %v744 = vunpack.c.h.bf16 %v739
    %v745 = vunpack.c.l.bf16 %v740
    %v746 = vunpack.c.l.bf16 %v741
    %v747 = vunpack.c.h.bf16 %v741
    %v748 = vunpack.c.l.bf16 %v742
    %749 = vmatprep.subr.bf16.mxu0 %v107
    %750 = vmatpush1.bf16.msra.mxu0 %v106
    %751 = vmatprep.subr.bf16.mxu0 %v110
    %752 = vmatpush1.bf16.msra.mxu0 %v109
    %753 = vmatprep.subr.bf16.mxu0 %v113
    %754 = vmatpush1.bf16.msra.mxu0 %v112
    %755 = vmatprep.subr.bf16.mxu0 %v116
    %756 = vmatpush1.bf16.msra.mxu0 %v115
    %757 = vmatprep.subr.bf16.mxu0 %v119
    %758 = vmatpush1.bf16.msra.mxu0 %v118
    %759 = vmatprep.subr.bf16.mxu0 %v122
    %760 = vmatpush1.bf16.msra.mxu0 %v121
    %761 = vmatprep.subr.bf16.mxu0 %v125
    %762 = vmatpush1.bf16.msra.mxu0 %v124
    %763 = vmatprep.subr.bf16.mxu0 %v128
    %764 = vmatpush1.bf16.msra.mxu0 %v127
    %765 = vmatprep.subr.bf16.mxu0 0
    %766 = vmatpush1.bf16.msra.mxu0 0
    %767 = vmatprep.subr.bf16.mxu0 0
    %768 = vmatpush1.bf16.msra.mxu0 0
    %769 = vmatprep.subr.bf16.mxu0 0
    %770 = vmatpush1.bf16.msra.mxu0 0
    %771 = vmatprep.subr.bf16.mxu0 0
    %772 = vmatpush1.bf16.msra.mxu0 0
    %773 = vmatprep.subr.bf16.mxu0 0
    %774 = vmatpush1.bf16.msra.mxu0 0
    %775 = vmatprep.subr.bf16.mxu0 0
    %776 = vmatpush1.bf16.msra.mxu0 0
    %777 = vmatprep.subr.bf16.mxu0 0
    %778 = vmatpush1.bf16.msra.mxu0 0
    %779 = vmatprep.subr.bf16.mxu0 0
    %780 = vmatpush1.bf16.msra.mxu0 0
    %781 = vmatprep.mubr.bf16.mxu0 0
    %782 = vmatmul.mubr.bf16.gmra.mrb[0].mxu0 %v727
    %v783 = vpop.f32.mrb[0].mxu0
    %v784 = vadd.f32 0.0, %v783
    %v785 = vpop.f32.mrb[0].mxu0
    %v786 = vadd.f32 0.0, %v785
    %v787 = vpop.f32.mrb[0].mxu0
    %v788 = vadd.f32 0.0, %v787
    %v789 = vpop.f32.mrb[0].mxu0
    %v790 = vadd.f32 0.0, %v789
    %791 = vdwg.mxu0
    %792 = vmatprep.subr.bf16.mxu0 0
    %793 = vmatpush1.bf16.msra.mxu0 %v108
    %794 = vmatprep.subr.bf16.mxu0 0
    %795 = vmatpush1.bf16.msra.mxu0 %v111
    %796 = vmatprep.subr.bf16.mxu0 0
    %797 = vmatpush1.bf16.msra.mxu0 %v114
    %798 = vmatprep.subr.bf16.mxu0 0
    %799 = vmatpush1.bf16.msra.mxu0 %v117
    %800 = vmatprep.subr.bf16.mxu0 0
    %801 = vmatpush1.bf16.msra.mxu0 %v120
    %802 = vmatprep.subr.bf16.mxu0 0
    %803 = vmatpush1.bf16.msra.mxu0 %v123
    %804 = vmatprep.subr.bf16.mxu0 0
    %805 = vmatpush1.bf16.msra.mxu0 %v126
    %806 = vmatprep.subr.bf16.mxu0 0
    %807 = vmatpush1.bf16.msra.mxu0 %v129
    %808 = vmatprep.subr.bf16.mxu0 0
    %809 = vmatpush1.bf16.msra.mxu0 0
    %810 = vmatprep.subr.bf16.mxu0 0
    %811 = vmatpush1.bf16.msra.mxu0 0
    %812 = vmatprep.subr.bf16.mxu0 0
    %813 = vmatpush1.bf16.msra.mxu0 0
    %814 = vmatprep.subr.bf16.mxu0 0
    %815 = vmatpush1.bf16.msra.mxu0 0
    %816 = vmatprep.subr.bf16.mxu0 0
    %817 = vmatpush1.bf16.msra.mxu0 0
    %818 = vmatprep.subr.bf16.mxu0 0
    %819 = vmatpush1.bf16.msra.mxu0 0
    %820 = vmatprep.subr.bf16.mxu0 0
    %821 = vmatpush1.bf16.msra.mxu0 0
    %822 = vmatprep.subr.bf16.mxu0 0
    %823 = vmatpush1.bf16.msra.mxu0 0
    %824 = vmatprep.mubr.bf16.mxu0 0
    %825 = vmatmul.mubr.bf16.gmra.mrb[0].mxu0 %v727
    %v826 = vpop.f32.mrb[0].mxu0
    %v827 = vadd.f32 0.0, %v826
    %v828 = vpop.f32.mrb[0].mxu0
    %v829 = vpop.f32.mrb[0].mxu0
    %v830 = vadd.f32 0.0, %v829
    %v831 = vpop.f32.mrb[0].mxu0
    %832 = vdwg.mxu0
    %v833 = vadd.f32 %v743, %v784
    %v834 = vadd.f32 %v746, %v788
    %v835 = vxor.u32 %v833, 2147483648
    %v836 = vxor.u32 %v834, 2147483648
    %v837 = vmul.f32 %v835, 1.442695
    %v838 = vpow.pop %v837
    %v839 = vmul.f32 %v836, 1.442695
    %v840 = vpow.pop %v839
    %v841 = vadd.f32 %v838, 1.0
    %v842 = vadd.f32 %v840, 1.0
    %v843 = vrcp.pop %v841
    %v844 = vmul.f32 1.0, %v843
    %v845 = vrcp.pop %v842
    %v846 = vmul.f32 1.0, %v845
    %v847 = vadd.f32 %v744, %v786
    %v848 = vadd.f32 %v747, %v790
    %v849 = vxor.u32 %v847, 2147483648
    %v850 = vxor.u32 %v848, 2147483648
    %v851 = vmul.f32 %v849, 1.442695
    %v852 = vpow.pop %v851
    %v853 = vmul.f32 %v850, 1.442695
    %v854 = vpow.pop %v853
    %v855 = vadd.f32 %v852, 1.0
    %v856 = vadd.f32 %v854, 1.0
    %v857 = vrcp.pop %v855
    %v858 = vmul.f32 1.0, %v857
    %v859 = vrcp.pop %v856
    %v860 = vmul.f32 1.0, %v859
    %v861 = vadd.f32 %v827, %v260
    %v862 = vadd.f32 %v830, %v260
    %v863 = vmul.f32 %v844, %v861
    %v864 = vmul.f32 %v846, %v862
    %v865 = vadd.f32 %v745, %v863
    %v866 = vadd.f32 %v748, %v864
    %v867 = vtanh.pop %v865
    %v868 = vtanh.pop %v866
    %v869 = vsub.f32 1.0, %v858
    %v870 = vsub.f32 1.0, %v860
    %v871 = vmul.f32 %v869, %v867
    %v872 = vmul.f32 %v870, %v868
    %v873 = vmul.f32 %v858, %v725
    %v874 = vmul.f32 %v860, %v726
    %v875 = vadd.f32 %v871, %v873
    %v876 = vadd.f32 %v872, %v874
    %v877 = vpack.c.bf16 %v876, %v875
    %v879 = vunpack.c.l.b16 %v877
    %v880 = vunpack.c.h.b16 %v877
    %v881 = vpack.c.b16 %v879, %v879
    %v882 = vpack.c.b16 %v880, %v880
    %s885 = scalar_lea.vmem [#allocation11], 32
    %886 = vst [vmem:[%s885] sm:$0xf] %v881
    %887 = vst [vmem:[%s885 + $0x4] sm:$0xf] %v882
    %s888 = scalar_lea.vmem [#allocation5], 120
    %v889 = vld [vmem:[%s888] sm:$0xff]
    %v890 = vld [vmem:[%s888 + $0x8] sm:$0xf]
    %v891 = vld [vmem:[%s888 + $0xc] sm:$0xff]
    %v892 = vld [vmem:[%s888 + $0x14] sm:$0xf]
    %v893 = vunpack.c.l.bf16 %v889
    %v894 = vunpack.c.h.bf16 %v889
    %v895 = vunpack.c.l.bf16 %v890
    %v896 = vunpack.c.l.bf16 %v891
    %v897 = vunpack.c.h.bf16 %v891
    %v898 = vunpack.c.l.bf16 %v892
    %899 = vmatprep.subr.bf16.mxu0 %v107
    %900 = vmatpush1.bf16.msra.mxu0 %v106
    %901 = vmatprep.subr.bf16.mxu0 %v110
    %902 = vmatpush1.bf16.msra.mxu0 %v109
    %903 = vmatprep.subr.bf16.mxu0 %v113
    %904 = vmatpush1.bf16.msra.mxu0 %v112
    %905 = vmatprep.subr.bf16.mxu0 %v116
    %906 = vmatpush1.bf16.msra.mxu0 %v115
    %907 = vmatprep.subr.bf16.mxu0 %v119
    %908 = vmatpush1.bf16.msra.mxu0 %v118
    %909 = vmatprep.subr.bf16.mxu0 %v122
    %910 = vmatpush1.bf16.msra.mxu0 %v121
    %911 = vmatprep.subr.bf16.mxu0 %v125
    %912 = vmatpush1.bf16.msra.mxu0 %v124
    %913 = vmatprep.subr.bf16.mxu0 %v128
    %914 = vmatpush1.bf16.msra.mxu0 %v127
    %915 = vmatprep.subr.bf16.mxu0 0
    %916 = vmatpush1.bf16.msra.mxu0 0
    %917 = vmatprep.subr.bf16.mxu0 0
    %918 = vmatpush1.bf16.msra.mxu0 0
    %919 = vmatprep.subr.bf16.mxu0 0
    %920 = vmatpush1.bf16.msra.mxu0 0
    %921 = vmatprep.subr.bf16.mxu0 0
    %922 = vmatpush1.bf16.msra.mxu0 0
    %923 = vmatprep.subr.bf16.mxu0 0
    %924 = vmatpush1.bf16.msra.mxu0 0
    %925 = vmatprep.subr.bf16.mxu0 0
    %926 = vmatpush1.bf16.msra.mxu0 0
    %927 = vmatprep.subr.bf16.mxu0 0
    %928 = vmatpush1.bf16.msra.mxu0 0
    %929 = vmatprep.subr.bf16.mxu0 0
    %930 = vmatpush1.bf16.msra.mxu0 0
    %931 = vmatprep.mubr.bf16.mxu0 0
    %932 = vmatmul.mubr.bf16.gmra.mrb[0].mxu0 %v877
    %v933 = vpop.f32.mrb[0].mxu0
    %v934 = vadd.f32 0.0, %v933
    %v935 = vpop.f32.mrb[0].mxu0
    %v936 = vadd.f32 0.0, %v935
    %v937 = vpop.f32.mrb[0].mxu0
    %v938 = vadd.f32 0.0, %v937
    %v939 = vpop.f32.mrb[0].mxu0
    %v940 = vadd.f32 0.0, %v939
    %941 = vdwg.mxu0
    %942 = vmatprep.subr.bf16.mxu0 0
    %943 = vmatpush1.bf16.msra.mxu0 %v108
    %944 = vmatprep.subr.bf16.mxu0 0
    %945 = vmatpush1.bf16.msra.mxu0 %v111
    %946 = vmatprep.subr.bf16.mxu0 0
    %947 = vmatpush1.bf16.msra.mxu0 %v114
    %948 = vmatprep.subr.bf16.mxu0 0
    %949 = vmatpush1.bf16.msra.mxu0 %v117
    %950 = vmatprep.subr.bf16.mxu0 0
    %951 = vmatpush1.bf16.msra.mxu0 %v120
    %952 = vmatprep.subr.bf16.mxu0 0
    %953 = vmatpush1.bf16.msra.mxu0 %v123
    %954 = vmatprep.subr.bf16.mxu0 0
    %955 = vmatpush1.bf16.msra.mxu0 %v126
    %956 = vmatprep.subr.bf16.mxu0 0
    %957 = vmatpush1.bf16.msra.mxu0 %v129
    %958 = vmatprep.subr.bf16.mxu0 0
    %959 = vmatpush1.bf16.msra.mxu0 0
    %960 = vmatprep.subr.bf16.mxu0 0
    %961 = vmatpush1.bf16.msra.mxu0 0
    %962 = vmatprep.subr.bf16.mxu0 0
    %963 = vmatpush1.bf16.msra.mxu0 0
    %964 = vmatprep.subr.bf16.mxu0 0
    %965 = vmatpush1.bf16.msra.mxu0 0
    %966 = vmatprep.subr.bf16.mxu0 0
    %967 = vmatpush1.bf16.msra.mxu0 0
    %968 = vmatprep.subr.bf16.mxu0 0
    %969 = vmatpush1.bf16.msra.mxu0 0
    %970 = vmatprep.subr.bf16.mxu0 0
    %971 = vmatpush1.bf16.msra.mxu0 0
    %972 = vmatprep.subr.bf16.mxu0 0
    %973 = vmatpush1.bf16.msra.mxu0 0
    %974 = vmatprep.mubr.bf16.mxu0 0
    %975 = vmatmul.mubr.bf16.gmra.mrb[0].mxu0 %v877
    %v976 = vpop.f32.mrb[0].mxu0
    %v977 = vadd.f32 0.0, %v976
    %v978 = vpop.f32.mrb[0].mxu0
    %v979 = vpop.f32.mrb[0].mxu0
    %v980 = vadd.f32 0.0, %v979
    %v981 = vpop.f32.mrb[0].mxu0
    %982 = vdwg.mxu0
    %v983 = vadd.f32 %v893, %v934
    %v984 = vadd.f32 %v896, %v938
    %v985 = vxor.u32 %v983, 2147483648
    %v986 = vxor.u32 %v984, 2147483648
    %v987 = vmul.f32 %v985, 1.442695
    %v988 = vpow.pop %v987
    %v989 = vmul.f32 %v986, 1.442695
    %v990 = vpow.pop %v989
    %v991 = vadd.f32 %v988, 1.0
    %v992 = vadd.f32 %v990, 1.0
    %v993 = vrcp.pop %v991
    %v994 = vmul.f32 1.0, %v993
    %v995 = vrcp.pop %v992
    %v996 = vmul.f32 1.0, %v995
    %v997 = vadd.f32 %v894, %v936
    %v998 = vadd.f32 %v897, %v940
    %v999 = vxor.u32 %v997, 2147483648
    %v1000 = vxor.u32 %v998, 2147483648
    %v1001 = vmul.f32 %v999, 1.442695
    %v1002 = vpow.pop %v1001
    %v1003 = vmul.f32 %v1000, 1.442695
    %v1004 = vpow.pop %v1003
    %v1005 = vadd.f32 %v1002, 1.0
    %v1006 = vadd.f32 %v1004, 1.0
    %v1007 = vrcp.pop %v1005
    %v1008 = vmul.f32 1.0, %v1007
    %v1009 = vrcp.pop %v1006
    %v1010 = vmul.f32 1.0, %v1009
    %v1011 = vadd.f32 %v977, %v260
    %v1012 = vadd.f32 %v980, %v260
    %v1013 = vmul.f32 %v994, %v1011
    %v1014 = vmul.f32 %v996, %v1012
    %v1015 = vadd.f32 %v895, %v1013
    %v1016 = vadd.f32 %v898, %v1014
    %v1017 = vtanh.pop %v1015
    %v1018 = vtanh.pop %v1016
    %v1019 = vsub.f32 1.0, %v1008
    %v1020 = vsub.f32 1.0, %v1010
    %v1021 = vmul.f32 %v1019, %v1017
    %v1022 = vmul.f32 %v1020, %v1018
    %v1023 = vmul.f32 %v1008, %v875
    %v1024 = vmul.f32 %v1010, %v876
    %v1025 = vadd.f32 %v1021, %v1023
    %v1026 = vadd.f32 %v1022, %v1024
    %v1027 = vpack.c.bf16 %v1026, %v1025
    %v1029 = vunpack.c.l.b16 %v1027
    %v1030 = vunpack.c.h.b16 %v1027
    %v1031 = vpack.c.b16 %v1029, %v1029
    %v1032 = vpack.c.b16 %v1030, %v1030
    %s1035 = scalar_lea.vmem [#allocation11], 40
    %1036 = vst [vmem:[%s1035] sm:$0xf] %v1031
    %1037 = vst [vmem:[%s1035 + $0x4] sm:$0xf] %v1032
    %s1038 = scalar_lea.vmem [#allocation5], 144
    %v1039 = vld [vmem:[%s1038] sm:$0xff]
    %v1040 = vld [vmem:[%s1038 + $0x8] sm:$0xf]
    %v1041 = vld [vmem:[%s1038 + $0xc] sm:$0xff]
    %v1042 = vld [vmem:[%s1038 + $0x14] sm:$0xf]
    %v1043 = vunpack.c.l.bf16 %v1039
    %v1044 = vunpack.c.h.bf16 %v1039
    %v1045 = vunpack.c.l.bf16 %v1040
    %v1046 = vunpack.c.l.bf16 %v1041
    %v1047 = vunpack.c.h.bf16 %v1041
    %v1048 = vunpack.c.l.bf16 %v1042
    %1049 = vmatprep.subr.bf16.mxu0 %v107
    %1050 = vmatpush1.bf16.msra.mxu0 %v106
    %1051 = vmatprep.subr.bf16.mxu0 %v110
    %1052 = vmatpush1.bf16.msra.mxu0 %v109
    %1053 = vmatprep.subr.bf16.mxu0 %v113
    %1054 = vmatpush1.bf16.msra.mxu0 %v112
    %1055 = vmatprep.subr.bf16.mxu0 %v116
    %1056 = vmatpush1.bf16.msra.mxu0 %v115
    %1057 = vmatprep.subr.bf16.mxu0 %v119
    %1058 = vmatpush1.bf16.msra.mxu0 %v118
    %1059 = vmatprep.subr.bf16.mxu0 %v122
    %1060 = vmatpush1.bf16.msra.mxu0 %v121
    %1061 = vmatprep.subr.bf16.mxu0 %v125
    %1062 = vmatpush1.bf16.msra.mxu0 %v124
    %1063 = vmatprep.subr.bf16.mxu0 %v128
    %1064 = vmatpush1.bf16.msra.mxu0 %v127
    %1065 = vmatprep.subr.bf16.mxu0 0
    %1066 = vmatpush1.bf16.msra.mxu0 0
    %1067 = vmatprep.subr.bf16.mxu0 0
    %1068 = vmatpush1.bf16.msra.mxu0 0
    %1069 = vmatprep.subr.bf16.mxu0 0
    %1070 = vmatpush1.bf16.msra.mxu0 0
    %1071 = vmatprep.subr.bf16.mxu0 0
    %1072 = vmatpush1.bf16.msra.mxu0 0
    %1073 = vmatprep.subr.bf16.mxu0 0
    %1074 = vmatpush1.bf16.msra.mxu0 0
    %1075 = vmatprep.subr.bf16.mxu0 0
    %1076 = vmatpush1.bf16.msra.mxu0 0
    %1077 = vmatprep.subr.bf16.mxu0 0
    %1078 = vmatpush1.bf16.msra.mxu0 0
    %1079 = vmatprep.subr.bf16.mxu0 0
    %1080 = vmatpush1.bf16.msra.mxu0 0
    %1081 = vmatprep.mubr.bf16.mxu0 0
    %1082 = vmatmul.mubr.bf16.gmra.mrb[0].mxu0 %v1027
    %v1083 = vpop.f32.mrb[0].mxu0
    %v1084 = vadd.f32 0.0, %v1083
    %v1085 = vpop.f32.mrb[0].mxu0
    %v1086 = vadd.f32 0.0, %v1085
    %v1087 = vpop.f32.mrb[0].mxu0
    %v1088 = vadd.f32 0.0, %v1087
    %v1089 = vpop.f32.mrb[0].mxu0
    %v1090 = vadd.f32 0.0, %v1089
    %1091 = vdwg.mxu0
    %1092 = vmatprep.subr.bf16.mxu0 0
    %1093 = vmatpush1.bf16.msra.mxu0 %v108
    %1094 = vmatprep.subr.bf16.mxu0 0
    %1095 = vmatpush1.bf16.msra.mxu0 %v111
    %1096 = vmatprep.subr.bf16.mxu0 0
    %1097 = vmatpush1.bf16.msra.mxu0 %v114
    %1098 = vmatprep.subr.bf16.mxu0 0
    %1099 = vmatpush1.bf16.msra.mxu0 %v117
    %1100 = vmatprep.subr.bf16.mxu0 0
    %1101 = vmatpush1.bf16.msra.mxu0 %v120
    %1102 = vmatprep.subr.bf16.mxu0 0
    %1103 = vmatpush1.bf16.msra.mxu0 %v123
    %1104 = vmatprep.subr.bf16.mxu0 0
    %1105 = vmatpush1.bf16.msra.mxu0 %v126
    %1106 = vmatprep.subr.bf16.mxu0 0
    %1107 = vmatpush1.bf16.msra.mxu0 %v129
    %1108 = vmatprep.subr.bf16.mxu0 0
    %1109 = vmatpush1.bf16.msra.mxu0 0
    %1110 = vmatprep.subr.bf16.mxu0 0
    %1111 = vmatpush1.bf16.msra.mxu0 0
    %1112 = vmatprep.subr.bf16.mxu0 0
    %1113 = vmatpush1.bf16.msra.mxu0 0
    %1114 = vmatprep.subr.bf16.mxu0 0
    %1115 = vmatpush1.bf16.msra.mxu0 0
    %1116 = vmatprep.subr.bf16.mxu0 0
    %1117 = vmatpush1.bf16.msra.mxu0 0
    %1118 = vmatprep.subr.bf16.mxu0 0
    %1119 = vmatpush1.bf16.msra.mxu0 0
    %1120 = vmatprep.subr.bf16.mxu0 0
    %1121 = vmatpush1.bf16.msra.mxu0 0
    %1122 = vmatprep.subr.bf16.mxu0 0
    %1123 = vmatpush1.bf16.msra.mxu0 0
    %1124 = vmatprep.mubr.bf16.mxu0 0
    %1125 = vmatmul.mubr.bf16.gmra.mrb[0].mxu0 %v1027
    %v1126 = vpop.f32.mrb[0].mxu0
    %v1127 = vadd.f32 0.0, %v1126
    %v1128 = vpop.f32.mrb[0].mxu0
    %v1129 = vpop.f32.mrb[0].mxu0
    %v1130 = vadd.f32 0.0, %v1129
    %v1131 = vpop.f32.mrb[0].mxu0
    %1132 = vdwg.mxu0
    %v1133 = vadd.f32 %v1043, %v1084
    %v1134 = vadd.f32 %v1046, %v1088
    %v1135 = vxor.u32 %v1133, 2147483648
    %v1136 = vxor.u32 %v1134, 2147483648
    %v1137 = vmul.f32 %v1135, 1.442695
    %v1138 = vpow.pop %v1137
    %v1139 = vmul.f32 %v1136, 1.442695
    %v1140 = vpow.pop %v1139
    %v1141 = vadd.f32 %v1138, 1.0
    %v1142 = vadd.f32 %v1140, 1.0
    %v1143 = vrcp.pop %v1141
    %v1144 = vmul.f32 1.0, %v1143
    %v1145 = vrcp.pop %v1142
    %v1146 = vmul.f32 1.0, %v1145
    %v1147 = vadd.f32 %v1044, %v1086
    %v1148 = vadd.f32 %v1047, %v1090
    %v1149 = vxor.u32 %v1147, 2147483648
    %v1150 = vxor.u32 %v1148, 2147483648
    %v1151 = vmul.f32 %v1149, 1.442695
    %v1152 = vpow.pop %v1151
    %v1153 = vmul.f32 %v1150, 1.442695
    %v1154 = vpow.pop %v1153
    %v1155 = vadd.f32 %v1152, 1.0
    %v1156 = vadd.f32 %v1154, 1.0
    %v1157 = vrcp.pop %v1155
    %v1158 = vmul.f32 1.0, %v1157
    %v1159 = vrcp.pop %v1156
    %v1160 = vmul.f32 1.0, %v1159
    %v1161 = vadd.f32 %v1127, %v260
    %v1162 = vadd.f32 %v1130, %v260
    %v1163 = vmul.f32 %v1144, %v1161
    %v1164 = vmul.f32 %v1146, %v1162
    %v1165 = vadd.f32 %v1045, %v1163
    %v1166 = vadd.f32 %v1048, %v1164
    %v1167 = vtanh.pop %v1165
    %v1168 = vtanh.pop %v1166
    %v1169 = vsub.f32 1.0, %v1158
    %v1170 = vsub.f32 1.0, %v1160
    %v1171 = vmul.f32 %v1169, %v1167
    %v1172 = vmul.f32 %v1170, %v1168
    %v1173 = vmul.f32 %v1158, %v1025
    %v1174 = vmul.f32 %v1160, %v1026
    %v1175 = vadd.f32 %v1171, %v1173
    %v1176 = vadd.f32 %v1172, %v1174
    %v1177 = vpack.c.bf16 %v1176, %v1175
    %v1179 = vunpack.c.l.b16 %v1177
    %v1180 = vunpack.c.h.b16 %v1177
    %v1181 = vpack.c.b16 %v1179, %v1179
    %v1182 = vpack.c.b16 %v1180, %v1180
    %s1185 = scalar_lea.vmem [#allocation11], 48
    %1186 = vst [vmem:[%s1185] sm:$0xf] %v1181
    %1187 = vst [vmem:[%s1185 + $0x4] sm:$0xf] %v1182
    %s1188 = scalar_lea.vmem [#allocation5], 168
    %v1189 = vld [vmem:[%s1188] sm:$0xff]
    %v1190 = vld [vmem:[%s1188 + $0x8] sm:$0xf]
    %v1191 = vld [vmem:[%s1188 + $0xc] sm:$0xff]
    %v1192 = vld [vmem:[%s1188 + $0x14] sm:$0xf]
    %v1193 = vunpack.c.l.bf16 %v1189
    %v1194 = vunpack.c.h.bf16 %v1189
    %v1195 = vunpack.c.l.bf16 %v1190
    %v1196 = vunpack.c.l.bf16 %v1191
    %v1197 = vunpack.c.h.bf16 %v1191
    %v1198 = vunpack.c.l.bf16 %v1192
    %1199 = vmatprep.subr.bf16.mxu0 %v107
    %1200 = vmatpush1.bf16.msra.mxu0 %v106
    %1201 = vmatprep.subr.bf16.mxu0 %v110
    %1202 = vmatpush1.bf16.msra.mxu0 %v109
    %1203 = vmatprep.subr.bf16.mxu0 %v113
    %1204 = vmatpush1.bf16.msra.mxu0 %v112
    %1205 = vmatprep.subr.bf16.mxu0 %v116
    %1206 = vmatpush1.bf16.msra.mxu0 %v115
    %1207 = vmatprep.subr.bf16.mxu0 %v119
    %1208 = vmatpush1.bf16.msra.mxu0 %v118
    %1209 = vmatprep.subr.bf16.mxu0 %v122
    %1210 = vmatpush1.bf16.msra.mxu0 %v121
    %1211 = vmatprep.subr.bf16.mxu0 %v125
    %1212 = vmatpush1.bf16.msra.mxu0 %v124
    %1213 = vmatprep.subr.bf16.mxu0 %v128
    %1214 = vmatpush1.bf16.msra.mxu0 %v127
    %1215 = vmatprep.subr.bf16.mxu0 0
    %1216 = vmatpush1.bf16.msra.mxu0 0
    %1217 = vmatprep.subr.bf16.mxu0 0
    %1218 = vmatpush1.bf16.msra.mxu0 0
    %1219 = vmatprep.subr.bf16.mxu0 0
    %1220 = vmatpush1.bf16.msra.mxu0 0
    %1221 = vmatprep.subr.bf16.mxu0 0
    %1222 = vmatpush1.bf16.msra.mxu0 0
    %1223 = vmatprep.subr.bf16.mxu0 0
    %1224 = vmatpush1.bf16.msra.mxu0 0
    %1225 = vmatprep.subr.bf16.mxu0 0
    %1226 = vmatpush1.bf16.msra.mxu0 0
    %1227 = vmatprep.subr.bf16.mxu0 0
    %1228 = vmatpush1.bf16.msra.mxu0 0
    %1229 = vmatprep.subr.bf16.mxu0 0
    %1230 = vmatpush1.bf16.msra.mxu0 0
    %1231 = vmatprep.mubr.bf16.mxu0 0
    %1232 = vmatmul.mubr.bf16.gmra.mrb[0].mxu0 %v1177
    %v1233 = vpop.f32.mrb[0].mxu0
    %v1234 = vadd.f32 0.0, %v1233
    %v1235 = vpop.f32.mrb[0].mxu0
    %v1236 = vadd.f32 0.0, %v1235
    %v1237 = vpop.f32.mrb[0].mxu0
    %v1238 = vadd.f32 0.0, %v1237
    %v1239 = vpop.f32.mrb[0].mxu0
    %v1240 = vadd.f32 0.0, %v1239
    %1241 = vdwg.mxu0
    %1242 = vmatprep.subr.bf16.mxu0 0
    %1243 = vmatpush1.bf16.msra.mxu0 %v108
    %1244 = vmatprep.subr.bf16.mxu0 0
    %1245 = vmatpush1.bf16.msra.mxu0 %v111
    %1246 = vmatprep.subr.bf16.mxu0 0
    %1247 = vmatpush1.bf16.msra.mxu0 %v114
    %1248 = vmatprep.subr.bf16.mxu0 0
    %1249 = vmatpush1.bf16.msra.mxu0 %v117
    %1250 = vmatprep.subr.bf16.mxu0 0
    %1251 = vmatpush1.bf16.msra.mxu0 %v120
    %1252 = vmatprep.subr.bf16.mxu0 0
    %1253 = vmatpush1.bf16.msra.mxu0 %v123
    %1254 = vmatprep.subr.bf16.mxu0 0
    %1255 = vmatpush1.bf16.msra.mxu0 %v126
    %1256 = vmatprep.subr.bf16.mxu0 0
    %1257 = vmatpush1.bf16.msra.mxu0 %v129
    %1258 = vmatprep.subr.bf16.mxu0 0
    %1259 = vmatpush1.bf16.msra.mxu0 0
    %1260 = vmatprep.subr.bf16.mxu0 0
    %1261 = vmatpush1.bf16.msra.mxu0 0
    %1262 = vmatprep.subr.bf16.mxu0 0
    %1263 = vmatpush1.bf16.msra.mxu0 0
    %1264 = vmatprep.subr.bf16.mxu0 0
    %1265 = vmatpush1.bf16.msra.mxu0 0
    %1266 = vmatprep.subr.bf16.mxu0 0
    %1267 = vmatpush1.bf16.msra.mxu0 0
    %1268 = vmatprep.subr.bf16.mxu0 0
    %1269 = vmatpush1.bf16.msra.mxu0 0
    %1270 = vmatprep.subr.bf16.mxu0 0
    %1271 = vmatpush1.bf16.msra.mxu0 0
    %1272 = vmatprep.subr.bf16.mxu0 0
    %1273 = vmatpush1.bf16.msra.mxu0 0
    %1274 = vmatprep.mubr.bf16.mxu0 0
    %1275 = vmatmul.mubr.bf16.gmra.mrb[0].mxu0 %v1177
    %v1276 = vpop.f32.mrb[0].mxu0
    %v1277 = vadd.f32 0.0, %v1276
    %v1278 = vpop.f32.mrb[0].mxu0
    %v1279 = vpop.f32.mrb[0].mxu0
    %v1280 = vadd.f32 0.0, %v1279
    %v1281 = vpop.f32.mrb[0].mxu0
    %1282 = vdwg.mxu0
    %v1283 = vadd.f32 %v1193, %v1234
    %v1284 = vadd.f32 %v1196, %v1238
    %v1285 = vxor.u32 %v1283, 2147483648
    %v1286 = vxor.u32 %v1284, 2147483648
    %v1287 = vmul.f32 %v1285, 1.442695
    %v1288 = vpow.pop %v1287
    %v1289 = vmul.f32 %v1286, 1.442695
    %v1290 = vpow.pop %v1289
    %v1291 = vadd.f32 %v1288, 1.0
    %v1292 = vadd.f32 %v1290, 1.0
    %v1293 = vrcp.pop %v1291
    %v1294 = vmul.f32 1.0, %v1293
    %v1295 = vrcp.pop %v1292
    %v1296 = vmul.f32 1.0, %v1295
    %v1297 = vadd.f32 %v1194, %v1236
    %v1298 = vadd.f32 %v1197, %v1240
    %v1299 = vxor.u32 %v1297, 2147483648
    %v1300 = vxor.u32 %v1298, 2147483648
    %v1301 = vmul.f32 %v1299, 1.442695
    %v1302 = vpow.pop %v1301
    %v1303 = vmul.f32 %v1300, 1.442695
    %v1304 = vpow.pop %v1303
    %v1305 = vadd.f32 %v1302, 1.0
    %v1306 = vadd.f32 %v1304, 1.0
    %v1307 = vrcp.pop %v1305
    %v1308 = vmul.f32 1.0, %v1307
    %v1309 = vrcp.pop %v1306
    %v1310 = vmul.f32 1.0, %v1309
    %v1311 = vadd.f32 %v1277, %v260
    %v1312 = vadd.f32 %v1280, %v260
    %v1313 = vmul.f32 %v1294, %v1311
    %v1314 = vmul.f32 %v1296, %v1312
    %v1315 = vadd.f32 %v1195, %v1313
    %v1316 = vadd.f32 %v1198, %v1314
    %v1317 = vtanh.pop %v1315
    %v1318 = vtanh.pop %v1316
    %v1319 = vsub.f32 1.0, %v1308
    %v1320 = vsub.f32 1.0, %v1310
    %v1321 = vmul.f32 %v1319, %v1317
    %v1322 = vmul.f32 %v1320, %v1318
    %v1323 = vmul.f32 %v1308, %v1175
    %v1324 = vmul.f32 %v1310, %v1176
    %v1325 = vadd.f32 %v1321, %v1323
    %v1326 = vadd.f32 %v1322, %v1324
    %v1327 = vpack.c.bf16 %v1326, %v1325
    %v1329 = vunpack.c.l.b16 %v1327
    %v1330 = vunpack.c.h.b16 %v1327
    %v1331 = vpack.c.b16 %v1329, %v1329
    %v1332 = vpack.c.b16 %v1330, %v1330
    %s1335 = scalar_lea.vmem [#allocation11], 56
    %1336 = vst [vmem:[%s1335] sm:$0xf] %v1331
    %1337 = vst [vmem:[%s1335 + $0x4] sm:$0xf] %v1332
    %1338 = vst [vmem:[#allocation4] sm:$0xff] %v1325
    %1339 = vst [vmem:[#allocation4 + $0x8] sm:$0xff] %v1326
    // Predicated region
    $region30: #{tpu_custom_call.1} parent=1 // pred_check
      %p1340 = pneg %p59
    $region31: #{tpu_custom_call.1} parent=1 // pred_check_branch
      %1342 = sbr.rel (%p1340) target = $region33
    $region32: #{tpu_custom_call.1} parent=1 // pred_region
      %1343 = vst [vmem:[#allocation12] sm:$0xff] %v1325
      %1344 = vst [vmem:[#allocation12 + $0x8] sm:$0xff] %v1326
    $region33: #{tpu_custom_call.1} parent=1 // pred_fallthru
      _
    // Predicated region
    $region34: #{tpu_custom_call.1} parent=1 // pred_check
      _
    $region35: #{tpu_custom_call.1} parent=1 // pred_check_branch
      %1346 = sbr.rel (0) target = $region37
    $region36: #{tpu_custom_call.1} parent=1 // pred_region
      %s1348 = ssub.s32 1024, 1024
      %1349 = vsyncadd [#allocation7], %s1348
      %s1350 = sshll.u32 [#allocation11], 4
      %s1351 = int_to_ptr.vmem [resolvable:$true] %s1350
      %1356 = dma.vmem_to_hbm [thread:$0]  %s1351, 1024, %s4, [#allocation7], 64, 64, 4
    $region37: #{tpu_custom_call.1} parent=1 // pred_fallthru
      _
    // Predicated region
    $region38: #{tpu_custom_call.1} parent=1 // pred_check
      _
    $region39: #{tpu_custom_call.1} parent=1 // pred_check_branch
      %1358 = sbr.rel (0) target = $region41
    $region40: #{tpu_custom_call.1} parent=1 // pred_region
      %s1360 = ssub.s32 256, 256
      %1361 = vsyncadd [#allocation13], %s1360
      %s1362 = sshll.u32 [#allocation12], 4
      %s1363 = int_to_ptr.vmem [resolvable:$true] %s1362
      %1368 = dma.vmem_to_hbm [thread:$0]  %s1363, 256, %s5, [#allocation13], 128, 128, 8
    $region41: #{tpu_custom_call.1} parent=1 // pred_fallthru
      _
    // Predicated region
    $region42: #{tpu_custom_call.1} parent=1 // pred_check
      _
    $region43: #{tpu_custom_call.1} parent=1 // pred_check_branch
      %1370 = sbr.rel (0) target = $region45
    $region44: #{tpu_custom_call.1} parent=1 // pred_region
      %1371 = dma.done [#allocation7], 1024
    $region45: #{tpu_custom_call.1} parent=1 // pred_fallthru
      _
    // Predicated region
    $region46: #{tpu_custom_call.1} parent=1 // pred_check
      _
    $region47: #{tpu_custom_call.1} parent=1 // pred_check_branch
      %1373 = sbr.rel (0) target = $region49
    $region48: #{tpu_custom_call.1} parent=1 // pred_region
      %1374 = dma.done [#allocation13], 256
    $region49: #{tpu_custom_call.1} parent=1 // pred_fallthru
      _
    %1375 = vsyncpa [#allocation6], 1
    %1376 = vsyncpa [#allocation9], 1
    %1377 = vsyncpa [#allocation7], 1
    %1378 = vsyncpa [#allocation13], 1
  %1379 = vsyncmov [#allocation3]
  %s1380 = vpop.sfrf %1379
  %p1381 = scmp.eq.s32.totalorder %s1380, 0
  %p1382 = pneg %p1381
  %1384 = shalt.err (%p1382)

</llo_original>
